<compile_context>
chip_gen: v5e
topology: v5e:2x2
jax: 0.10.0
libtpu: 0.0.40
codegen_flags: <defaults>
</compile_context>

<pallas_src>
import jax
import jax.numpy as jnp
from jax.experimental import pallas as pl
from jax.experimental.pallas import tpu as pltpu


def _lstm2_recurrence_kernel(xp_ref,    # (S, B, 4H)  precomputed x @ W_ih0 + b0
                             whh1_ref,  # (H, 4H)     layer-0 recurrent weights
                             wih2_ref,  # (H, 4H)     layer-1 input weights
                             whh2_ref,  # (H, 4H)     layer-1 recurrent weights
                             b2_ref,    # (1, 4H)     layer-1 bias (b_ih + b_hh)
                             out_ref):  # (S, B, H)   layer-1 hidden sequence
    S, B, G = xp_ref.shape
    H = out_ref.shape[-1]

    # ---- loop-invariant constants, hoisted out of the time loop -------------
    # Single-tanh activation over the packed (B, 4H) gate tile:
    #   sigmoid(x) = 0.5 * tanh(0.5 * x) + 0.5
    #   act = scale * tanh(scale * gates) + shift
    # with scale=1, shift=0 on the 'g' lanes (true tanh, PyTorch gate order
    # [i, f, g, o]) and scale=0.5, shift=0.5 on the sigmoid lanes.
    lane = jax.lax.broadcasted_iota(jnp.int32, (B, G), 1)
    is_g = jnp.logical_and(lane >= 2 * H, lane < 3 * H)
    act_scale = jnp.where(is_g, 1.0, 0.5).astype(jnp.float32)
    act_shift = jnp.where(is_g, 0.0, 0.5).astype(jnp.float32)
    b2 = jnp.broadcast_to(b2_ref[...], (B, G)).astype(jnp.float32)

    def cell_update(gates, c):
        t = jnp.tanh(gates * act_scale)        # ONE EUP pass over (B, 4H)
        act = t * act_scale + act_shift        # VPU fixup for sigmoid lanes
        i = act[:, 0:H]
        f = act[:, H:2 * H]
        g = act[:, 2 * H:3 * H]
        o = act[:, 3 * H:4 * H]
        c_new = f * c + i * g
        h_new = o * jnp.tanh(c_new)
        return h_new, c_new

    def step(t, carry):
        # Skewed recurrence: gates1 for the CURRENT step arrives via the carry.
        h1, c1, h2, c2, gates1 = carry
        h1, c1 = cell_update(gates1, c1)

        # Layer-0 gate pre-activation for the NEXT step.  It depends only on
        # the fresh h1 (like the layer-1 dots below), so its MXU work can
        # overlap with layer-1's within this body.  Index is clamped on the
        # last step; that extra result is simply discarded.
        tp1 = jnp.minimum(t + 1, S - 1)
        gates1_next = xp_ref[tp1] + jnp.dot(
            h1, whh1_ref[...], preferred_element_type=jnp.float32)

        # Layer-1 gates for the CURRENT step.  Weights are re-loaded from VMEM
        # each iteration instead of being pinned in vregs, keeping register
        # pressure below the spill threshold when the loop is unrolled.
        gates2 = (jnp.dot(h1, wih2_ref[...], preferred_element_type=jnp.float32)
                  + jnp.dot(h2, whh2_ref[...], preferred_element_type=jnp.float32)
                  + b2)
        h2, c2 = cell_update(gates2, c2)
        out_ref[t] = h2
        return (h1, c1, h2, c2, gates1_next)

    zeros = jnp.zeros((B, H), jnp.float32)
    gates1_0 = xp_ref[0]              # h1(-1) == 0  ->  recurrent term vanishes
    jax.lax.fori_loop(0, S, step, (zeros, zeros, zeros, zeros, gates1_0),
                      unroll=(S if S <= 16 else 4))


def lstm_reg_forward(x, params):
    """x: (S, B, I) float32.  Returns (S, B, O) float32."""
    S, B, I = x.shape
    H = params["whh1"].shape[0]

    # Pad batch to a multiple of 8 (one sublane group).  Padded rows are
    # independent of the real ones and dropped after the kernel.
    B_pad = ((B + 7) // 8) * 8
    x_p = x if B_pad == B else jnp.pad(x, ((0, 0), (0, B_pad - B), (0, 0)))

    # Hoisted, time-independent GEMM: layer-0 input projection for all steps.
    xproj = (jnp.einsum("sbi,ig->sbg", x_p, params["wih1"],
                        preferred_element_type=jnp.float32)
             + params["b1"][None]).astype(jnp.float32)

    # VMEM-scaling guard: with grid=(1,) both xproj (S*B_pad*4H f32) and the
    # output (S*B_pad*H f32) stay VMEM-resident for the whole call.
    resident_bytes = (S * B_pad * 4 * H + S * B_pad * H) * 4
    if resident_bytes > 24 * 1024 * 1024:
        # TODO(synk): time-chunk the grid (grid=(S//Tc,), h/c in VMEM scratch)
        # for very long sequences so the blocks fit v7x's 32MiB scoped VMEM
        # and HBM<->VMEM overlap is restored.
        raise ValueError("sequence too long for single-resident-block kernel")

    full = lambda a: pl.BlockSpec(a.shape, lambda t: (0,) * a.ndim)

    h2seq = pl.pallas_call(
        _lstm2_recurrence_kernel,
        out_shape=jax.ShapeDtypeStruct((S, B_pad, H), jnp.float32),
        grid_spec=pltpu.PrefetchScalarGridSpec(
            num_scalar_prefetch=0,
            grid=(1,),                       # single step; time loop is in-kernel
            in_specs=[
                full(xproj),
                full(params["whh1"]),
                full(params["wih2"]),
                full(params["whh2"]),
                full(params["b2"]),
            ],
            out_specs=pl.BlockSpec((S, B_pad, H), lambda t: (0, 0, 0)),
        ),
        compiler_params=pltpu.CompilerParams(
            dimension_semantics=("arbitrary",),   # recurrence is sequential
        ),
    )(xproj, params["whh1"], params["wih2"], params["whh2"], params["b2"])

    h2seq = h2seq[:, :B]  # drop batch padding

    # Hoisted regression head: one (S*B, H) @ (H, O) GEMM.
    y = jnp.einsum("sbh,ho->sbo", h2seq, params["wreg"]) + params["breg"][None]
    return y.astype(jnp.float32)


def init_params(key, input_size, hidden_size, output_size=1):
    """Deterministic init mirroring PyTorch's U(-1/sqrt(H), 1/sqrt(H)).
    Weights stored pre-transposed (in_dim, out_dim); LSTM biases pre-summed."""
    H = hidden_size
    k = 1.0 / jnp.sqrt(jnp.float32(H))
    keys = jax.random.split(key, 10)
    u = lambda kk, shape: jax.random.uniform(kk, shape, jnp.float32, -k, k)
    return {
        # layer 0
        "wih1": u(keys[0], (input_size, 4 * H)),
        "whh1": u(keys[1], (H, 4 * H)),
        "b1":   u(keys[2], (1, 4 * H)) + u(keys[3], (1, 4 * H)),  # b_ih + b_hh
        # layer 1
        "wih2": u(keys[4], (H, 4 * H)),
        "whh2": u(keys[5], (H, 4 * H)),
        "b2":   u(keys[6], (1, 4 * H)) + u(keys[7], (1, 4 * H)),
        # regression head
        "wreg": u(keys[8], (H, output_size)),
        "breg": u(keys[9], (1, output_size)),
    }


def _lstm_reg_reference(x, params):
    """Pure-JAX (XLA) reference with identical semantics, for a sanity check."""
    S, B, I = x.shape
    H = params["whh1"].shape[0]

    def gates_split(g):
        return (jax.nn.sigmoid(g[:, 0:H]), jax.nn.sigmoid(g[:, H:2 * H]),
                jnp.tanh(g[:, 2 * H:3 * H]), jax.nn.sigmoid(g[:, 3 * H:4 * H]))

    def cell(carry, x_t):
        h1, c1, h2, c2 = carry
        i1, f1, g1, o1 = gates_split(
            x_t @ params["wih1"] + h1 @ params["whh1"] + params["b1"])
        c1 = f1 * c1 + i1 * g1
        h1 = o1 * jnp.tanh(c1)
        i2, f2, g2, o2 = gates_split(
            h1 @ params["wih2"] + h2 @ params["whh2"] + params["b2"])
        c2 = f2 * c2 + i2 * g2
        h2 = o2 * jnp.tanh(c2)
        return (h1, c1, h2, c2), h2

    z = jnp.zeros((B, H), jnp.float32)
    _, h2seq = jax.lax.scan(cell, (z, z, z, z), x)
    return jnp.einsum("sbh,ho->sbo", h2seq, params["wreg"]) + params["breg"][None]


if __name__ == "__main__":
    SEQ, BATCH, INPUT, HIDDEN, OUTPUT = 8, 4, 8, 32, 1

    key = jax.random.PRNGKey(0)
    kx, kp = jax.random.split(key)
    x = jax.random.normal(kx, (SEQ, BATCH, INPUT), dtype=jnp.float32)
    params = init_params(kp, INPUT, HIDDEN, OUTPUT)

    y = jax.block_until_ready(jax.jit(lstm_reg_forward)(x, params))
    assert y.shape == (SEQ, BATCH, OUTPUT) and y.dtype == jnp.float32

    y_ref = jax.block_until_ready(_lstm_reg_reference(x, params))
    assert jnp.allclose(y, y_ref, rtol=1e-4, atol=1e-4), (
        f"max abs err {float(jnp.max(jnp.abs(y - y_ref)))}")

    print("KERNEL_OK")
</pallas_src>

<mosaic_0001>
module attributes {stable_mosaic.version = 11 : i64} {
  func.func @_lstm2_recurrence_kernel(%arg0: i32, %arg1: memref<8x8x128xf32, #tpu.memory_space<vmem>>, %arg2: memref<32x128xf32, #tpu.memory_space<vmem>>, %arg3: memref<32x128xf32, #tpu.memory_space<vmem>>, %arg4: memref<32x128xf32, #tpu.memory_space<vmem>>, %arg5: memref<1x128xf32, #tpu.memory_space<vmem>>, %arg6: memref<8x8x32xf32, #tpu.memory_space<vmem>>) attributes {dimension_semantics = [#tpu.dimension_semantics<arbitrary>], iteration_bounds = array<i64: 1>, scalar_prefetch = 0 : i64, scratch_operands = 0 : i64, tpu.core_type = #tpu.core_type<tc>, window_params = [{pipeline_mode = #tpu.pipeline_mode<synchronous>, transform_indices = @transform_0, window_bounds = array<i64: 8, 8, 128>}, {pipeline_mode = #tpu.pipeline_mode<synchronous>, transform_indices = @transform_1, window_bounds = array<i64: 32, 128>}, {pipeline_mode = #tpu.pipeline_mode<synchronous>, transform_indices = @transform_2, window_bounds = array<i64: 32, 128>}, {pipeline_mode = #tpu.pipeline_mode<synchronous>, transform_indices = @transform_3, window_bounds = array<i64: 32, 128>}, {pipeline_mode = #tpu.pipeline_mode<synchronous>, transform_indices = @transform_4, window_bounds = array<i64: 1, 128>}, {pipeline_mode = #tpu.pipeline_mode<synchronous>, transform_indices = @transform_5, window_bounds = array<i64: 8, 8, 32>}]} {
    %0 = tpu.iota {dimensions = array<i32: 1>} : vector<8x128xi32>
    %c64_i32 = arith.constant 64 : i32
    %1 = vector.broadcast %c64_i32 : i32 to vector<8x128xi32>
    %2 = arith.cmpi sge, %0, %1 : vector<8x128xi32>
    %c96_i32 = arith.constant 96 : i32
    %3 = vector.broadcast %c96_i32 : i32 to vector<8x128xi32>
    %4 = arith.cmpi slt, %0, %3 : vector<8x128xi32>
    %5 = arith.andi %2, %4 : vector<8x128xi1>
    %cst = arith.constant 1.000000e+00 : f32
    %cst_0 = arith.constant 5.000000e-01 : f32
    %6 = vector.broadcast %cst : f32 to vector<8x128xf32>
    %7 = vector.broadcast %cst_0 : f32 to vector<8x128xf32>
    %8 = arith.select %5, %6, %7 : vector<8x128xi1>, vector<8x128xf32>
    %cst_1 = arith.constant 0.000000e+00 : f32
    %cst_2 = arith.constant 5.000000e-01 : f32
    %9 = vector.broadcast %cst_1 : f32 to vector<8x128xf32>
    %10 = vector.broadcast %cst_2 : f32 to vector<8x128xf32>
    %11 = arith.select %5, %9, %10 : vector<8x128xi1>, vector<8x128xf32>
    %c0 = arith.constant 0 : index
    %c0_3 = arith.constant 0 : index
    %12 = vector.load %arg5[%c0, %c0_3] : memref<1x128xf32, #tpu.memory_space<vmem>>, vector<1x128xf32>
    %13 = vector.shape_cast %12 : vector<1x128xf32> to vector<1x128xf32>
    %14 = vector.broadcast %13 : vector<1x128xf32> to vector<8x128xf32>
    %cst_4 = arith.constant 0.000000e+00 : f32
    %15 = vector.broadcast %cst_4 : f32 to vector<8x32xf32>
    %c0_5 = arith.constant 0 : index
    %c0_6 = arith.constant 0 : index
    %c0_7 = arith.constant 0 : index
    %16 = vector.load %arg1[%c0_5, %c0_6, %c0_7] : memref<8x8x128xf32, #tpu.memory_space<vmem>>, vector<1x8x128xf32>
    %17 = vector.shape_cast %16 : vector<1x8x128xf32> to vector<8x128xf32>
    %c0_i32 = arith.constant 0 : i32
    %18 = arith.mulf %17, %8 : vector<8x128xf32>
    %19 = math.tanh %18 : vector<8x128xf32>
    %20 = arith.mulf %19, %8 : vector<8x128xf32>
    %21 = arith.addf %20, %11 : vector<8x128xf32>
    %22 = vector.extract_strided_slice %21 {offsets = [0, 0], sizes = [8, 32], strides = [1, 1]} : vector<8x128xf32> to vector<8x32xf32>
    %23 = vector.extract_strided_slice %21 {offsets = [0, 32], sizes = [8, 32], strides = [1, 1]} : vector<8x128xf32> to vector<8x32xf32>
    %24 = vector.extract_strided_slice %21 {offsets = [0, 64], sizes = [8, 32], strides = [1, 1]} : vector<8x128xf32> to vector<8x32xf32>
    %25 = vector.extract_strided_slice %21 {offsets = [0, 96], sizes = [8, 32], strides = [1, 1]} : vector<8x128xf32> to vector<8x32xf32>
    %26 = arith.mulf %23, %15 : vector<8x32xf32>
    %27 = arith.mulf %22, %24 : vector<8x32xf32>
    %28 = arith.addf %26, %27 : vector<8x32xf32>
    %29 = math.tanh %28 : vector<8x32xf32>
    %30 = arith.mulf %25, %29 : vector<8x32xf32>
    %c1_i32 = arith.constant 1 : i32
    %31 = arith.addi %c0_i32, %c1_i32 : i32
    %c7_i32 = arith.constant 7 : i32
    %32 = arith.minsi %31, %c7_i32 : i32
    %33 = arith.index_cast %32 : i32 to index
    %c0_8 = arith.constant 0 : index
    %c0_9 = arith.constant 0 : index
    %34 = vector.load %arg1[%33, %c0_8, %c0_9] : memref<8x8x128xf32, #tpu.memory_space<vmem>>, vector<1x8x128xf32>
    %35 = vector.shape_cast %34 : vector<1x8x128xf32> to vector<8x128xf32>
    %c0_10 = arith.constant 0 : index
    %c0_11 = arith.constant 0 : index
    %36 = vector.load %arg2[%c0_10, %c0_11] : memref<32x128xf32, #tpu.memory_space<vmem>>, vector<32x128xf32>
    %cst_12 = arith.constant dense<0.000000e+00> : vector<8x128xf32>
    %37 = tpu.matmul %30, %36, %cst_12 {dimension_numbers = #tpu.dot_dimension_numbers<[1], [0], [0], [1], [0, 0, 1, 1], [], []>} : vector<8x32xf32>, vector<32x128xf32>, vector<8x128xf32> -> vector<8x128xf32>
    %38 = arith.addf %35, %37 : vector<8x128xf32>
    %c0_13 = arith.constant 0 : index
    %c0_14 = arith.constant 0 : index
    %39 = vector.load %arg3[%c0_13, %c0_14] : memref<32x128xf32, #tpu.memory_space<vmem>>, vector<32x128xf32>
    %cst_15 = arith.constant dense<0.000000e+00> : vector<8x128xf32>
    %40 = tpu.matmul %30, %39, %cst_15 {dimension_numbers = #tpu.dot_dimension_numbers<[1], [0], [0], [1], [0, 0, 1, 1], [], []>} : vector<8x32xf32>, vector<32x128xf32>, vector<8x128xf32> -> vector<8x128xf32>
    %c0_16 = arith.constant 0 : index
    %c0_17 = arith.constant 0 : index
    %41 = vector.load %arg4[%c0_16, %c0_17] : memref<32x128xf32, #tpu.memory_space<vmem>>, vector<32x128xf32>
    %cst_18 = arith.constant dense<0.000000e+00> : vector<8x128xf32>
    %42 = tpu.matmul %15, %41, %cst_18 {dimension_numbers = #tpu.dot_dimension_numbers<[1], [0], [0], [1], [0, 0, 1, 1], [], []>} : vector<8x32xf32>, vector<32x128xf32>, vector<8x128xf32> -> vector<8x128xf32>
    %43 = arith.addf %40, %42 : vector<8x128xf32>
    %44 = arith.addf %43, %14 : vector<8x128xf32>
    %45 = arith.mulf %44, %8 : vector<8x128xf32>
    %46 = math.tanh %45 : vector<8x128xf32>
    %47 = arith.mulf %46, %8 : vector<8x128xf32>
    %48 = arith.addf %47, %11 : vector<8x128xf32>
    %49 = vector.extract_strided_slice %48 {offsets = [0, 0], sizes = [8, 32], strides = [1, 1]} : vector<8x128xf32> to vector<8x32xf32>
    %50 = vector.extract_strided_slice %48 {offsets = [0, 32], sizes = [8, 32], strides = [1, 1]} : vector<8x128xf32> to vector<8x32xf32>
    %51 = vector.extract_strided_slice %48 {offsets = [0, 64], sizes = [8, 32], strides = [1, 1]} : vector<8x128xf32> to vector<8x32xf32>
    %52 = vector.extract_strided_slice %48 {offsets = [0, 96], sizes = [8, 32], strides = [1, 1]} : vector<8x128xf32> to vector<8x32xf32>
    %53 = arith.mulf %50, %15 : vector<8x32xf32>
    %54 = arith.mulf %49, %51 : vector<8x32xf32>
    %55 = arith.addf %53, %54 : vector<8x32xf32>
    %56 = math.tanh %55 : vector<8x32xf32>
    %57 = arith.mulf %52, %56 : vector<8x32xf32>
    %58 = arith.index_cast %c0_i32 : i32 to index
    %c0_19 = arith.constant 0 : index
    %c0_20 = arith.constant 0 : index
    %59 = vector.load %arg6[%58, %c0_19, %c0_20] : memref<8x8x32xf32, #tpu.memory_space<vmem>>, vector<1x8x32xf32>
    %60 = vector.shape_cast %59 : vector<1x8x32xf32> to vector<8x32xf32>
    %61 = vector.shape_cast %57 : vector<8x32xf32> to vector<1x8x32xf32>
    tpu.vector_store %arg6[%58, %c0_19, %c0_20], %61 {strides = array<i32>} : memref<8x8x32xf32, #tpu.memory_space<vmem>>, vector<1x8x32xf32>,
    %c1_i32_21 = arith.constant 1 : i32
    %62 = arith.mulf %38, %8 : vector<8x128xf32>
    %63 = math.tanh %62 : vector<8x128xf32>
    %64 = arith.mulf %63, %8 : vector<8x128xf32>
    %65 = arith.addf %64, %11 : vector<8x128xf32>
    %66 = vector.extract_strided_slice %65 {offsets = [0, 0], sizes = [8, 32], strides = [1, 1]} : vector<8x128xf32> to vector<8x32xf32>
    %67 = vector.extract_strided_slice %65 {offsets = [0, 32], sizes = [8, 32], strides = [1, 1]} : vector<8x128xf32> to vector<8x32xf32>
    %68 = vector.extract_strided_slice %65 {offsets = [0, 64], sizes = [8, 32], strides = [1, 1]} : vector<8x128xf32> to vector<8x32xf32>
    %69 = vector.extract_strided_slice %65 {offsets = [0, 96], sizes = [8, 32], strides = [1, 1]} : vector<8x128xf32> to vector<8x32xf32>
    %70 = arith.mulf %67, %28 : vector<8x32xf32>
    %71 = arith.mulf %66, %68 : vector<8x32xf32>
    %72 = arith.addf %70, %71 : vector<8x32xf32>
    %73 = math.tanh %72 : vector<8x32xf32>
    %74 = arith.mulf %69, %73 : vector<8x32xf32>
    %c1_i32_22 = arith.constant 1 : i32
    %75 = arith.addi %c1_i32_21, %c1_i32_22 : i32
    %c7_i32_23 = arith.constant 7 : i32
    %76 = arith.minsi %75, %c7_i32_23 : i32
    %77 = arith.index_cast %76 : i32 to index
    %c0_24 = arith.constant 0 : index
    %c0_25 = arith.constant 0 : index
    %78 = vector.load %arg1[%77, %c0_24, %c0_25] : memref<8x8x128xf32, #tpu.memory_space<vmem>>, vector<1x8x128xf32>
    %79 = vector.shape_cast %78 : vector<1x8x128xf32> to vector<8x128xf32>
    %c0_26 = arith.constant 0 : index
    %c0_27 = arith.constant 0 : index
    %80 = vector.load %arg2[%c0_26, %c0_27] : memref<32x128xf32, #tpu.memory_space<vmem>>, vector<32x128xf32>
    %cst_28 = arith.constant dense<0.000000e+00> : vector<8x128xf32>
    %81 = tpu.matmul %74, %80, %cst_28 {dimension_numbers = #tpu.dot_dimension_numbers<[1], [0], [0], [1], [0, 0, 1, 1], [], []>} : vector<8x32xf32>, vector<32x128xf32>, vector<8x128xf32> -> vector<8x128xf32>
    %82 = arith.addf %79, %81 : vector<8x128xf32>
    %c0_29 = arith.constant 0 : index
    %c0_30 = arith.constant 0 : index
    %83 = vector.load %arg3[%c0_29, %c0_30] : memref<32x128xf32, #tpu.memory_space<vmem>>, vector<32x128xf32>
    %cst_31 = arith.constant dense<0.000000e+00> : vector<8x128xf32>
    %84 = tpu.matmul %74, %83, %cst_31 {dimension_numbers = #tpu.dot_dimension_numbers<[1], [0], [0], [1], [0, 0, 1, 1], [], []>} : vector<8x32xf32>, vector<32x128xf32>, vector<8x128xf32> -> vector<8x128xf32>
    %c0_32 = arith.constant 0 : index
    %c0_33 = arith.constant 0 : index
    %85 = vector.load %arg4[%c0_32, %c0_33] : memref<32x128xf32, #tpu.memory_space<vmem>>, vector<32x128xf32>
    %cst_34 = arith.constant dense<0.000000e+00> : vector<8x128xf32>
    %86 = tpu.matmul %57, %85, %cst_34 {dimension_numbers = #tpu.dot_dimension_numbers<[1], [0], [0], [1], [0, 0, 1, 1], [], []>} : vector<8x32xf32>, vector<32x128xf32>, vector<8x128xf32> -> vector<8x128xf32>
    %87 = arith.addf %84, %86 : vector<8x128xf32>
    %88 = arith.addf %87, %14 : vector<8x128xf32>
    %89 = arith.mulf %88, %8 : vector<8x128xf32>
    %90 = math.tanh %89 : vector<8x128xf32>
    %91 = arith.mulf %90, %8 : vector<8x128xf32>
    %92 = arith.addf %91, %11 : vector<8x128xf32>
    %93 = vector.extract_strided_slice %92 {offsets = [0, 0], sizes = [8, 32], strides = [1, 1]} : vector<8x128xf32> to vector<8x32xf32>
    %94 = vector.extract_strided_slice %92 {offsets = [0, 32], sizes = [8, 32], strides = [1, 1]} : vector<8x128xf32> to vector<8x32xf32>
    %95 = vector.extract_strided_slice %92 {offsets = [0, 64], sizes = [8, 32], strides = [1, 1]} : vector<8x128xf32> to vector<8x32xf32>
    %96 = vector.extract_strided_slice %92 {offsets = [0, 96], sizes = [8, 32], strides = [1, 1]} : vector<8x128xf32> to vector<8x32xf32>
    %97 = arith.mulf %94, %55 : vector<8x32xf32>
    %98 = arith.mulf %93, %95 : vector<8x32xf32>
    %99 = arith.addf %97, %98 : vector<8x32xf32>
    %100 = math.tanh %99 : vector<8x32xf32>
    %101 = arith.mulf %96, %100 : vector<8x32xf32>
    %102 = arith.index_cast %c1_i32_21 : i32 to index
    %c0_35 = arith.constant 0 : index
    %c0_36 = arith.constant 0 : index
    %103 = vector.load %arg6[%102, %c0_35, %c0_36] : memref<8x8x32xf32, #tpu.memory_space<vmem>>, vector<1x8x32xf32>
    %104 = vector.shape_cast %103 : vector<1x8x32xf32> to vector<8x32xf32>
    %105 = vector.shape_cast %101 : vector<8x32xf32> to vector<1x8x32xf32>
    tpu.vector_store %arg6[%102, %c0_35, %c0_36], %105 {strides = array<i32>} : memref<8x8x32xf32, #tpu.memory_space<vmem>>, vector<1x8x32xf32>,
    %c2_i32 = arith.constant 2 : i32
    %106 = arith.mulf %82, %8 : vector<8x128xf32>
    %107 = math.tanh %106 : vector<8x128xf32>
    %108 = arith.mulf %107, %8 : vector<8x128xf32>
    %109 = arith.addf %108, %11 : vector<8x128xf32>
    %110 = vector.extract_strided_slice %109 {offsets = [0, 0], sizes = [8, 32], strides = [1, 1]} : vector<8x128xf32> to vector<8x32xf32>
    %111 = vector.extract_strided_slice %109 {offsets = [0, 32], sizes = [8, 32], strides = [1, 1]} : vector<8x128xf32> to vector<8x32xf32>
    %112 = vector.extract_strided_slice %109 {offsets = [0, 64], sizes = [8, 32], strides = [1, 1]} : vector<8x128xf32> to vector<8x32xf32>
    %113 = vector.extract_strided_slice %109 {offsets = [0, 96], sizes = [8, 32], strides = [1, 1]} : vector<8x128xf32> to vector<8x32xf32>
    %114 = arith.mulf %111, %72 : vector<8x32xf32>
    %115 = arith.mulf %110, %112 : vector<8x32xf32>
    %116 = arith.addf %114, %115 : vector<8x32xf32>
    %117 = math.tanh %116 : vector<8x32xf32>
    %118 = arith.mulf %113, %117 : vector<8x32xf32>
    %c1_i32_37 = arith.constant 1 : i32
    %119 = arith.addi %c2_i32, %c1_i32_37 : i32
    %c7_i32_38 = arith.constant 7 : i32
    %120 = arith.minsi %119, %c7_i32_38 : i32
    %121 = arith.index_cast %120 : i32 to index
    %c0_39 = arith.constant 0 : index
    %c0_40 = arith.constant 0 : index
    %122 = vector.load %arg1[%121, %c0_39, %c0_40] : memref<8x8x128xf32, #tpu.memory_space<vmem>>, vector<1x8x128xf32>
    %123 = vector.shape_cast %122 : vector<1x8x128xf32> to vector<8x128xf32>
    %c0_41 = arith.constant 0 : index
    %c0_42 = arith.constant 0 : index
    %124 = vector.load %arg2[%c0_41, %c0_42] : memref<32x128xf32, #tpu.memory_space<vmem>>, vector<32x128xf32>
    %cst_43 = arith.constant dense<0.000000e+00> : vector<8x128xf32>
    %125 = tpu.matmul %118, %124, %cst_43 {dimension_numbers = #tpu.dot_dimension_numbers<[1], [0], [0], [1], [0, 0, 1, 1], [], []>} : vector<8x32xf32>, vector<32x128xf32>, vector<8x128xf32> -> vector<8x128xf32>
    %126 = arith.addf %123, %125 : vector<8x128xf32>
    %c0_44 = arith.constant 0 : index
    %c0_45 = arith.constant 0 : index
    %127 = vector.load %arg3[%c0_44, %c0_45] : memref<32x128xf32, #tpu.memory_space<vmem>>, vector<32x128xf32>
    %cst_46 = arith.constant dense<0.000000e+00> : vector<8x128xf32>
    %128 = tpu.matmul %118, %127, %cst_46 {dimension_numbers = #tpu.dot_dimension_numbers<[1], [0], [0], [1], [0, 0, 1, 1], [], []>} : vector<8x32xf32>, vector<32x128xf32>, vector<8x128xf32> -> vector<8x128xf32>
    %c0_47 = arith.constant 0 : index
    %c0_48 = arith.constant 0 : index
    %129 = vector.load %arg4[%c0_47, %c0_48] : memref<32x128xf32, #tpu.memory_space<vmem>>, vector<32x128xf32>
    %cst_49 = arith.constant dense<0.000000e+00> : vector<8x128xf32>
    %130 = tpu.matmul %101, %129, %cst_49 {dimension_numbers = #tpu.dot_dimension_numbers<[1], [0], [0], [1], [0, 0, 1, 1], [], []>} : vector<8x32xf32>, vector<32x128xf32>, vector<8x128xf32> -> vector<8x128xf32>
    %131 = arith.addf %128, %130 : vector<8x128xf32>
    %132 = arith.addf %131, %14 : vector<8x128xf32>
    %133 = arith.mulf %132, %8 : vector<8x128xf32>
    %134 = math.tanh %133 : vector<8x128xf32>
    %135 = arith.mulf %134, %8 : vector<8x128xf32>
    %136 = arith.addf %135, %11 : vector<8x128xf32>
    %137 = vector.extract_strided_slice %136 {offsets = [0, 0], sizes = [8, 32], strides = [1, 1]} : vector<8x128xf32> to vector<8x32xf32>
    %138 = vector.extract_strided_slice %136 {offsets = [0, 32], sizes = [8, 32], strides = [1, 1]} : vector<8x128xf32> to vector<8x32xf32>
    %139 = vector.extract_strided_slice %136 {offsets = [0, 64], sizes = [8, 32], strides = [1, 1]} : vector<8x128xf32> to vector<8x32xf32>
    %140 = vector.extract_strided_slice %136 {offsets = [0, 96], sizes = [8, 32], strides = [1, 1]} : vector<8x128xf32> to vector<8x32xf32>
    %141 = arith.mulf %138, %99 : vector<8x32xf32>
    %142 = arith.mulf %137, %139 : vector<8x32xf32>
    %143 = arith.addf %141, %142 : vector<8x32xf32>
    %144 = math.tanh %143 : vector<8x32xf32>
    %145 = arith.mulf %140, %144 : vector<8x32xf32>
    %146 = arith.index_cast %c2_i32 : i32 to index
    %c0_50 = arith.constant 0 : index
    %c0_51 = arith.constant 0 : index
    %147 = vector.load %arg6[%146, %c0_50, %c0_51] : memref<8x8x32xf32, #tpu.memory_space<vmem>>, vector<1x8x32xf32>
    %148 = vector.shape_cast %147 : vector<1x8x32xf32> to vector<8x32xf32>
    %149 = vector.shape_cast %145 : vector<8x32xf32> to vector<1x8x32xf32>
    tpu.vector_store %arg6[%146, %c0_50, %c0_51], %149 {strides = array<i32>} : memref<8x8x32xf32, #tpu.memory_space<vmem>>, vector<1x8x32xf32>,
    %c3_i32 = arith.constant 3 : i32
    %150 = arith.mulf %126, %8 : vector<8x128xf32>
    %151 = math.tanh %150 : vector<8x128xf32>
    %152 = arith.mulf %151, %8 : vector<8x128xf32>
    %153 = arith.addf %152, %11 : vector<8x128xf32>
    %154 = vector.extract_strided_slice %153 {offsets = [0, 0], sizes = [8, 32], strides = [1, 1]} : vector<8x128xf32> to vector<8x32xf32>
    %155 = vector.extract_strided_slice %153 {offsets = [0, 32], sizes = [8, 32], strides = [1, 1]} : vector<8x128xf32> to vector<8x32xf32>
    %156 = vector.extract_strided_slice %153 {offsets = [0, 64], sizes = [8, 32], strides = [1, 1]} : vector<8x128xf32> to vector<8x32xf32>
    %157 = vector.extract_strided_slice %153 {offsets = [0, 96], sizes = [8, 32], strides = [1, 1]} : vector<8x128xf32> to vector<8x32xf32>
    %158 = arith.mulf %155, %116 : vector<8x32xf32>
    %159 = arith.mulf %154, %156 : vector<8x32xf32>
    %160 = arith.addf %158, %159 : vector<8x32xf32>
    %161 = math.tanh %160 : vector<8x32xf32>
    %162 = arith.mulf %157, %161 : vector<8x32xf32>
    %c1_i32_52 = arith.constant 1 : i32
    %163 = arith.addi %c3_i32, %c1_i32_52 : i32
    %c7_i32_53 = arith.constant 7 : i32
    %164 = arith.minsi %163, %c7_i32_53 : i32
    %165 = arith.index_cast %164 : i32 to index
    %c0_54 = arith.constant 0 : index
    %c0_55 = arith.constant 0 : index
    %166 = vector.load %arg1[%165, %c0_54, %c0_55] : memref<8x8x128xf32, #tpu.memory_space<vmem>>, vector<1x8x128xf32>
    %167 = vector.shape_cast %166 : vector<1x8x128xf32> to vector<8x128xf32>
    %c0_56 = arith.constant 0 : index
    %c0_57 = arith.constant 0 : index
    %168 = vector.load %arg2[%c0_56, %c0_57] : memref<32x128xf32, #tpu.memory_space<vmem>>, vector<32x128xf32>
    %cst_58 = arith.constant dense<0.000000e+00> : vector<8x128xf32>
    %169 = tpu.matmul %162, %168, %cst_58 {dimension_numbers = #tpu.dot_dimension_numbers<[1], [0], [0], [1], [0, 0, 1, 1], [], []>} : vector<8x32xf32>, vector<32x128xf32>, vector<8x128xf32> -> vector<8x128xf32>
    %170 = arith.addf %167, %169 : vector<8x128xf32>
    %c0_59 = arith.constant 0 : index
    %c0_60 = arith.constant 0 : index
    %171 = vector.load %arg3[%c0_59, %c0_60] : memref<32x128xf32, #tpu.memory_space<vmem>>, vector<32x128xf32>
    %cst_61 = arith.constant dense<0.000000e+00> : vector<8x128xf32>
    %172 = tpu.matmul %162, %171, %cst_61 {dimension_numbers = #tpu.dot_dimension_numbers<[1], [0], [0], [1], [0, 0, 1, 1], [], []>} : vector<8x32xf32>, vector<32x128xf32>, vector<8x128xf32> -> vector<8x128xf32>
    %c0_62 = arith.constant 0 : index
    %c0_63 = arith.constant 0 : index
    %173 = vector.load %arg4[%c0_62, %c0_63] : memref<32x128xf32, #tpu.memory_space<vmem>>, vector<32x128xf32>
    %cst_64 = arith.constant dense<0.000000e+00> : vector<8x128xf32>
    %174 = tpu.matmul %145, %173, %cst_64 {dimension_numbers = #tpu.dot_dimension_numbers<[1], [0], [0], [1], [0, 0, 1, 1], [], []>} : vector<8x32xf32>, vector<32x128xf32>, vector<8x128xf32> -> vector<8x128xf32>
    %175 = arith.addf %172, %174 : vector<8x128xf32>
    %176 = arith.addf %175, %14 : vector<8x128xf32>
    %177 = arith.mulf %176, %8 : vector<8x128xf32>
    %178 = math.tanh %177 : vector<8x128xf32>
    %179 = arith.mulf %178, %8 : vector<8x128xf32>
    %180 = arith.addf %179, %11 : vector<8x128xf32>
    %181 = vector.extract_strided_slice %180 {offsets = [0, 0], sizes = [8, 32], strides = [1, 1]} : vector<8x128xf32> to vector<8x32xf32>
    %182 = vector.extract_strided_slice %180 {offsets = [0, 32], sizes = [8, 32], strides = [1, 1]} : vector<8x128xf32> to vector<8x32xf32>
    %183 = vector.extract_strided_slice %180 {offsets = [0, 64], sizes = [8, 32], strides = [1, 1]} : vector<8x128xf32> to vector<8x32xf32>
    %184 = vector.extract_strided_slice %180 {offsets = [0, 96], sizes = [8, 32], strides = [1, 1]} : vector<8x128xf32> to vector<8x32xf32>
    %185 = arith.mulf %182, %143 : vector<8x32xf32>
    %186 = arith.mulf %181, %183 : vector<8x32xf32>
    %187 = arith.addf %185, %186 : vector<8x32xf32>
    %188 = math.tanh %187 : vector<8x32xf32>
    %189 = arith.mulf %184, %188 : vector<8x32xf32>
    %190 = arith.index_cast %c3_i32 : i32 to index
    %c0_65 = arith.constant 0 : index
    %c0_66 = arith.constant 0 : index
    %191 = vector.load %arg6[%190, %c0_65, %c0_66] : memref<8x8x32xf32, #tpu.memory_space<vmem>>, vector<1x8x32xf32>
    %192 = vector.shape_cast %191 : vector<1x8x32xf32> to vector<8x32xf32>
    %193 = vector.shape_cast %189 : vector<8x32xf32> to vector<1x8x32xf32>
    tpu.vector_store %arg6[%190, %c0_65, %c0_66], %193 {strides = array<i32>} : memref<8x8x32xf32, #tpu.memory_space<vmem>>, vector<1x8x32xf32>,
    %c4_i32 = arith.constant 4 : i32
    %194 = arith.mulf %170, %8 : vector<8x128xf32>
    %195 = math.tanh %194 : vector<8x128xf32>
    %196 = arith.mulf %195, %8 : vector<8x128xf32>
    %197 = arith.addf %196, %11 : vector<8x128xf32>
    %198 = vector.extract_strided_slice %197 {offsets = [0, 0], sizes = [8, 32], strides = [1, 1]} : vector<8x128xf32> to vector<8x32xf32>
    %199 = vector.extract_strided_slice %197 {offsets = [0, 32], sizes = [8, 32], strides = [1, 1]} : vector<8x128xf32> to vector<8x32xf32>
    %200 = vector.extract_strided_slice %197 {offsets = [0, 64], sizes = [8, 32], strides = [1, 1]} : vector<8x128xf32> to vector<8x32xf32>
    %201 = vector.extract_strided_slice %197 {offsets = [0, 96], sizes = [8, 32], strides = [1, 1]} : vector<8x128xf32> to vector<8x32xf32>
    %202 = arith.mulf %199, %160 : vector<8x32xf32>
    %203 = arith.mulf %198, %200 : vector<8x32xf32>
    %204 = arith.addf %202, %203 : vector<8x32xf32>
    %205 = math.tanh %204 : vector<8x32xf32>
    %206 = arith.mulf %201, %205 : vector<8x32xf32>
    %c1_i32_67 = arith.constant 1 : i32
    %207 = arith.addi %c4_i32, %c1_i32_67 : i32
    %c7_i32_68 = arith.constant 7 : i32
    %208 = arith.minsi %207, %c7_i32_68 : i32
    %209 = arith.index_cast %208 : i32 to index
    %c0_69 = arith.constant 0 : index
    %c0_70 = arith.constant 0 : index
    %210 = vector.load %arg1[%209, %c0_69, %c0_70] : memref<8x8x128xf32, #tpu.memory_space<vmem>>, vector<1x8x128xf32>
    %211 = vector.shape_cast %210 : vector<1x8x128xf32> to vector<8x128xf32>
    %c0_71 = arith.constant 0 : index
    %c0_72 = arith.constant 0 : index
    %212 = vector.load %arg2[%c0_71, %c0_72] : memref<32x128xf32, #tpu.memory_space<vmem>>, vector<32x128xf32>
    %cst_73 = arith.constant dense<0.000000e+00> : vector<8x128xf32>
    %213 = tpu.matmul %206, %212, %cst_73 {dimension_numbers = #tpu.dot_dimension_numbers<[1], [0], [0], [1], [0, 0, 1, 1], [], []>} : vector<8x32xf32>, vector<32x128xf32>, vector<8x128xf32> -> vector<8x128xf32>
    %214 = arith.addf %211, %213 : vector<8x128xf32>
    %c0_74 = arith.constant 0 : index
    %c0_75 = arith.constant 0 : index
    %215 = vector.load %arg3[%c0_74, %c0_75] : memref<32x128xf32, #tpu.memory_space<vmem>>, vector<32x128xf32>
    %cst_76 = arith.constant dense<0.000000e+00> : vector<8x128xf32>
    %216 = tpu.matmul %206, %215, %cst_76 {dimension_numbers = #tpu.dot_dimension_numbers<[1], [0], [0], [1], [0, 0, 1, 1], [], []>} : vector<8x32xf32>, vector<32x128xf32>, vector<8x128xf32> -> vector<8x128xf32>
    %c0_77 = arith.constant 0 : index
    %c0_78 = arith.constant 0 : index
    %217 = vector.load %arg4[%c0_77, %c0_78] : memref<32x128xf32, #tpu.memory_space<vmem>>, vector<32x128xf32>
    %cst_79 = arith.constant dense<0.000000e+00> : vector<8x128xf32>
    %218 = tpu.matmul %189, %217, %cst_79 {dimension_numbers = #tpu.dot_dimension_numbers<[1], [0], [0], [1], [0, 0, 1, 1], [], []>} : vector<8x32xf32>, vector<32x128xf32>, vector<8x128xf32> -> vector<8x128xf32>
    %219 = arith.addf %216, %218 : vector<8x128xf32>
    %220 = arith.addf %219, %14 : vector<8x128xf32>
    %221 = arith.mulf %220, %8 : vector<8x128xf32>
    %222 = math.tanh %221 : vector<8x128xf32>
    %223 = arith.mulf %222, %8 : vector<8x128xf32>
    %224 = arith.addf %223, %11 : vector<8x128xf32>
    %225 = vector.extract_strided_slice %224 {offsets = [0, 0], sizes = [8, 32], strides = [1, 1]} : vector<8x128xf32> to vector<8x32xf32>
    %226 = vector.extract_strided_slice %224 {offsets = [0, 32], sizes = [8, 32], strides = [1, 1]} : vector<8x128xf32> to vector<8x32xf32>
    %227 = vector.extract_strided_slice %224 {offsets = [0, 64], sizes = [8, 32], strides = [1, 1]} : vector<8x128xf32> to vector<8x32xf32>
    %228 = vector.extract_strided_slice %224 {offsets = [0, 96], sizes = [8, 32], strides = [1, 1]} : vector<8x128xf32> to vector<8x32xf32>
    %229 = arith.mulf %226, %187 : vector<8x32xf32>
    %230 = arith.mulf %225, %227 : vector<8x32xf32>
    %231 = arith.addf %229, %230 : vector<8x32xf32>
    %232 = math.tanh %231 : vector<8x32xf32>
    %233 = arith.mulf %228, %232 : vector<8x32xf32>
    %234 = arith.index_cast %c4_i32 : i32 to index
    %c0_80 = arith.constant 0 : index
    %c0_81 = arith.constant 0 : index
    %235 = vector.load %arg6[%234, %c0_80, %c0_81] : memref<8x8x32xf32, #tpu.memory_space<vmem>>, vector<1x8x32xf32>
    %236 = vector.shape_cast %235 : vector<1x8x32xf32> to vector<8x32xf32>
    %237 = vector.shape_cast %233 : vector<8x32xf32> to vector<1x8x32xf32>
    tpu.vector_store %arg6[%234, %c0_80, %c0_81], %237 {strides = array<i32>} : memref<8x8x32xf32, #tpu.memory_space<vmem>>, vector<1x8x32xf32>,
    %c5_i32 = arith.constant 5 : i32
    %238 = arith.mulf %214, %8 : vector<8x128xf32>
    %239 = math.tanh %238 : vector<8x128xf32>
    %240 = arith.mulf %239, %8 : vector<8x128xf32>
    %241 = arith.addf %240, %11 : vector<8x128xf32>
    %242 = vector.extract_strided_slice %241 {offsets = [0, 0], sizes = [8, 32], strides = [1, 1]} : vector<8x128xf32> to vector<8x32xf32>
    %243 = vector.extract_strided_slice %241 {offsets = [0, 32], sizes = [8, 32], strides = [1, 1]} : vector<8x128xf32> to vector<8x32xf32>
    %244 = vector.extract_strided_slice %241 {offsets = [0, 64], sizes = [8, 32], strides = [1, 1]} : vector<8x128xf32> to vector<8x32xf32>
    %245 = vector.extract_strided_slice %241 {offsets = [0, 96], sizes = [8, 32], strides = [1, 1]} : vector<8x128xf32> to vector<8x32xf32>
    %246 = arith.mulf %243, %204 : vector<8x32xf32>
    %247 = arith.mulf %242, %244 : vector<8x32xf32>
    %248 = arith.addf %246, %247 : vector<8x32xf32>
    %249 = math.tanh %248 : vector<8x32xf32>
    %250 = arith.mulf %245, %249 : vector<8x32xf32>
    %c1_i32_82 = arith.constant 1 : i32
    %251 = arith.addi %c5_i32, %c1_i32_82 : i32
    %c7_i32_83 = arith.constant 7 : i32
    %252 = arith.minsi %251, %c7_i32_83 : i32
    %253 = arith.index_cast %252 : i32 to index
    %c0_84 = arith.constant 0 : index
    %c0_85 = arith.constant 0 : index
    %254 = vector.load %arg1[%253, %c0_84, %c0_85] : memref<8x8x128xf32, #tpu.memory_space<vmem>>, vector<1x8x128xf32>
    %255 = vector.shape_cast %254 : vector<1x8x128xf32> to vector<8x128xf32>
    %c0_86 = arith.constant 0 : index
    %c0_87 = arith.constant 0 : index
    %256 = vector.load %arg2[%c0_86, %c0_87] : memref<32x128xf32, #tpu.memory_space<vmem>>, vector<32x128xf32>
    %cst_88 = arith.constant dense<0.000000e+00> : vector<8x128xf32>
    %257 = tpu.matmul %250, %256, %cst_88 {dimension_numbers = #tpu.dot_dimension_numbers<[1], [0], [0], [1], [0, 0, 1, 1], [], []>} : vector<8x32xf32>, vector<32x128xf32>, vector<8x128xf32> -> vector<8x128xf32>
    %258 = arith.addf %255, %257 : vector<8x128xf32>
    %c0_89 = arith.constant 0 : index
    %c0_90 = arith.constant 0 : index
    %259 = vector.load %arg3[%c0_89, %c0_90] : memref<32x128xf32, #tpu.memory_space<vmem>>, vector<32x128xf32>
    %cst_91 = arith.constant dense<0.000000e+00> : vector<8x128xf32>
    %260 = tpu.matmul %250, %259, %cst_91 {dimension_numbers = #tpu.dot_dimension_numbers<[1], [0], [0], [1], [0, 0, 1, 1], [], []>} : vector<8x32xf32>, vector<32x128xf32>, vector<8x128xf32> -> vector<8x128xf32>
    %c0_92 = arith.constant 0 : index
    %c0_93 = arith.constant 0 : index
    %261 = vector.load %arg4[%c0_92, %c0_93] : memref<32x128xf32, #tpu.memory_space<vmem>>, vector<32x128xf32>
    %cst_94 = arith.constant dense<0.000000e+00> : vector<8x128xf32>
    %262 = tpu.matmul %233, %261, %cst_94 {dimension_numbers = #tpu.dot_dimension_numbers<[1], [0], [0], [1], [0, 0, 1, 1], [], []>} : vector<8x32xf32>, vector<32x128xf32>, vector<8x128xf32> -> vector<8x128xf32>
    %263 = arith.addf %260, %262 : vector<8x128xf32>
    %264 = arith.addf %263, %14 : vector<8x128xf32>
    %265 = arith.mulf %264, %8 : vector<8x128xf32>
    %266 = math.tanh %265 : vector<8x128xf32>
    %267 = arith.mulf %266, %8 : vector<8x128xf32>
    %268 = arith.addf %267, %11 : vector<8x128xf32>
    %269 = vector.extract_strided_slice %268 {offsets = [0, 0], sizes = [8, 32], strides = [1, 1]} : vector<8x128xf32> to vector<8x32xf32>
    %270 = vector.extract_strided_slice %268 {offsets = [0, 32], sizes = [8, 32], strides = [1, 1]} : vector<8x128xf32> to vector<8x32xf32>
    %271 = vector.extract_strided_slice %268 {offsets = [0, 64], sizes = [8, 32], strides = [1, 1]} : vector<8x128xf32> to vector<8x32xf32>
    %272 = vector.extract_strided_slice %268 {offsets = [0, 96], sizes = [8, 32], strides = [1, 1]} : vector<8x128xf32> to vector<8x32xf32>
    %273 = arith.mulf %270, %231 : vector<8x32xf32>
    %274 = arith.mulf %269, %271 : vector<8x32xf32>
    %275 = arith.addf %273, %274 : vector<8x32xf32>
    %276 = math.tanh %275 : vector<8x32xf32>
    %277 = arith.mulf %272, %276 : vector<8x32xf32>
    %278 = arith.index_cast %c5_i32 : i32 to index
    %c0_95 = arith.constant 0 : index
    %c0_96 = arith.constant 0 : index
    %279 = vector.load %arg6[%278, %c0_95, %c0_96] : memref<8x8x32xf32, #tpu.memory_space<vmem>>, vector<1x8x32xf32>
    %280 = vector.shape_cast %279 : vector<1x8x32xf32> to vector<8x32xf32>
    %281 = vector.shape_cast %277 : vector<8x32xf32> to vector<1x8x32xf32>
    tpu.vector_store %arg6[%278, %c0_95, %c0_96], %281 {strides = array<i32>} : memref<8x8x32xf32, #tpu.memory_space<vmem>>, vector<1x8x32xf32>,
    %c6_i32 = arith.constant 6 : i32
    %282 = arith.mulf %258, %8 : vector<8x128xf32>
    %283 = math.tanh %282 : vector<8x128xf32>
    %284 = arith.mulf %283, %8 : vector<8x128xf32>
    %285 = arith.addf %284, %11 : vector<8x128xf32>
    %286 = vector.extract_strided_slice %285 {offsets = [0, 0], sizes = [8, 32], strides = [1, 1]} : vector<8x128xf32> to vector<8x32xf32>
    %287 = vector.extract_strided_slice %285 {offsets = [0, 32], sizes = [8, 32], strides = [1, 1]} : vector<8x128xf32> to vector<8x32xf32>
    %288 = vector.extract_strided_slice %285 {offsets = [0, 64], sizes = [8, 32], strides = [1, 1]} : vector<8x128xf32> to vector<8x32xf32>
    %289 = vector.extract_strided_slice %285 {offsets = [0, 96], sizes = [8, 32], strides = [1, 1]} : vector<8x128xf32> to vector<8x32xf32>
    %290 = arith.mulf %287, %248 : vector<8x32xf32>
    %291 = arith.mulf %286, %288 : vector<8x32xf32>
    %292 = arith.addf %290, %291 : vector<8x32xf32>
    %293 = math.tanh %292 : vector<8x32xf32>
    %294 = arith.mulf %289, %293 : vector<8x32xf32>
    %c1_i32_97 = arith.constant 1 : i32
    %295 = arith.addi %c6_i32, %c1_i32_97 : i32
    %c7_i32_98 = arith.constant 7 : i32
    %296 = arith.minsi %295, %c7_i32_98 : i32
    %297 = arith.index_cast %296 : i32 to index
    %c0_99 = arith.constant 0 : index
    %c0_100 = arith.constant 0 : index
    %298 = vector.load %arg1[%297, %c0_99, %c0_100] : memref<8x8x128xf32, #tpu.memory_space<vmem>>, vector<1x8x128xf32>
    %299 = vector.shape_cast %298 : vector<1x8x128xf32> to vector<8x128xf32>
    %c0_101 = arith.constant 0 : index
    %c0_102 = arith.constant 0 : index
    %300 = vector.load %arg2[%c0_101, %c0_102] : memref<32x128xf32, #tpu.memory_space<vmem>>, vector<32x128xf32>
    %cst_103 = arith.constant dense<0.000000e+00> : vector<8x128xf32>
    %301 = tpu.matmul %294, %300, %cst_103 {dimension_numbers = #tpu.dot_dimension_numbers<[1], [0], [0], [1], [0, 0, 1, 1], [], []>} : vector<8x32xf32>, vector<32x128xf32>, vector<8x128xf32> -> vector<8x128xf32>
    %302 = arith.addf %299, %301 : vector<8x128xf32>
    %c0_104 = arith.constant 0 : index
    %c0_105 = arith.constant 0 : index
    %303 = vector.load %arg3[%c0_104, %c0_105] : memref<32x128xf32, #tpu.memory_space<vmem>>, vector<32x128xf32>
    %cst_106 = arith.constant dense<0.000000e+00> : vector<8x128xf32>
    %304 = tpu.matmul %294, %303, %cst_106 {dimension_numbers = #tpu.dot_dimension_numbers<[1], [0], [0], [1], [0, 0, 1, 1], [], []>} : vector<8x32xf32>, vector<32x128xf32>, vector<8x128xf32> -> vector<8x128xf32>
    %c0_107 = arith.constant 0 : index
    %c0_108 = arith.constant 0 : index
    %305 = vector.load %arg4[%c0_107, %c0_108] : memref<32x128xf32, #tpu.memory_space<vmem>>, vector<32x128xf32>
    %cst_109 = arith.constant dense<0.000000e+00> : vector<8x128xf32>
    %306 = tpu.matmul %277, %305, %cst_109 {dimension_numbers = #tpu.dot_dimension_numbers<[1], [0], [0], [1], [0, 0, 1, 1], [], []>} : vector<8x32xf32>, vector<32x128xf32>, vector<8x128xf32> -> vector<8x128xf32>
    %307 = arith.addf %304, %306 : vector<8x128xf32>
    %308 = arith.addf %307, %14 : vector<8x128xf32>
    %309 = arith.mulf %308, %8 : vector<8x128xf32>
    %310 = math.tanh %309 : vector<8x128xf32>
    %311 = arith.mulf %310, %8 : vector<8x128xf32>
    %312 = arith.addf %311, %11 : vector<8x128xf32>
    %313 = vector.extract_strided_slice %312 {offsets = [0, 0], sizes = [8, 32], strides = [1, 1]} : vector<8x128xf32> to vector<8x32xf32>
    %314 = vector.extract_strided_slice %312 {offsets = [0, 32], sizes = [8, 32], strides = [1, 1]} : vector<8x128xf32> to vector<8x32xf32>
    %315 = vector.extract_strided_slice %312 {offsets = [0, 64], sizes = [8, 32], strides = [1, 1]} : vector<8x128xf32> to vector<8x32xf32>
    %316 = vector.extract_strided_slice %312 {offsets = [0, 96], sizes = [8, 32], strides = [1, 1]} : vector<8x128xf32> to vector<8x32xf32>
    %317 = arith.mulf %314, %275 : vector<8x32xf32>
    %318 = arith.mulf %313, %315 : vector<8x32xf32>
    %319 = arith.addf %317, %318 : vector<8x32xf32>
    %320 = math.tanh %319 : vector<8x32xf32>
    %321 = arith.mulf %316, %320 : vector<8x32xf32>
    %322 = arith.index_cast %c6_i32 : i32 to index
    %c0_110 = arith.constant 0 : index
    %c0_111 = arith.constant 0 : index
    %323 = vector.load %arg6[%322, %c0_110, %c0_111] : memref<8x8x32xf32, #tpu.memory_space<vmem>>, vector<1x8x32xf32>
    %324 = vector.shape_cast %323 : vector<1x8x32xf32> to vector<8x32xf32>
    %325 = vector.shape_cast %321 : vector<8x32xf32> to vector<1x8x32xf32>
    tpu.vector_store %arg6[%322, %c0_110, %c0_111], %325 {strides = array<i32>} : memref<8x8x32xf32, #tpu.memory_space<vmem>>, vector<1x8x32xf32>,
    %c7_i32_112 = arith.constant 7 : i32
    %326 = arith.mulf %302, %8 : vector<8x128xf32>
    %327 = math.tanh %326 : vector<8x128xf32>
    %328 = arith.mulf %327, %8 : vector<8x128xf32>
    %329 = arith.addf %328, %11 : vector<8x128xf32>
    %330 = vector.extract_strided_slice %329 {offsets = [0, 0], sizes = [8, 32], strides = [1, 1]} : vector<8x128xf32> to vector<8x32xf32>
    %331 = vector.extract_strided_slice %329 {offsets = [0, 32], sizes = [8, 32], strides = [1, 1]} : vector<8x128xf32> to vector<8x32xf32>
    %332 = vector.extract_strided_slice %329 {offsets = [0, 64], sizes = [8, 32], strides = [1, 1]} : vector<8x128xf32> to vector<8x32xf32>
    %333 = vector.extract_strided_slice %329 {offsets = [0, 96], sizes = [8, 32], strides = [1, 1]} : vector<8x128xf32> to vector<8x32xf32>
    %334 = arith.mulf %331, %292 : vector<8x32xf32>
    %335 = arith.mulf %330, %332 : vector<8x32xf32>
    %336 = arith.addf %334, %335 : vector<8x32xf32>
    %337 = math.tanh %336 : vector<8x32xf32>
    %338 = arith.mulf %333, %337 : vector<8x32xf32>
    %c1_i32_113 = arith.constant 1 : i32
    %339 = arith.addi %c7_i32_112, %c1_i32_113 : i32
    %c7_i32_114 = arith.constant 7 : i32
    %340 = arith.minsi %339, %c7_i32_114 : i32
    %341 = arith.index_cast %340 : i32 to index
    %c0_115 = arith.constant 0 : index
    %c0_116 = arith.constant 0 : index
    %342 = vector.load %arg1[%341, %c0_115, %c0_116] : memref<8x8x128xf32, #tpu.memory_space<vmem>>, vector<1x8x128xf32>
    %343 = vector.shape_cast %342 : vector<1x8x128xf32> to vector<8x128xf32>
    %c0_117 = arith.constant 0 : index
    %c0_118 = arith.constant 0 : index
    %344 = vector.load %arg2[%c0_117, %c0_118] : memref<32x128xf32, #tpu.memory_space<vmem>>, vector<32x128xf32>
    %cst_119 = arith.constant dense<0.000000e+00> : vector<8x128xf32>
    %345 = tpu.matmul %338, %344, %cst_119 {dimension_numbers = #tpu.dot_dimension_numbers<[1], [0], [0], [1], [0, 0, 1, 1], [], []>} : vector<8x32xf32>, vector<32x128xf32>, vector<8x128xf32> -> vector<8x128xf32>
    %346 = arith.addf %343, %345 : vector<8x128xf32>
    %c0_120 = arith.constant 0 : index
    %c0_121 = arith.constant 0 : index
    %347 = vector.load %arg3[%c0_120, %c0_121] : memref<32x128xf32, #tpu.memory_space<vmem>>, vector<32x128xf32>
    %cst_122 = arith.constant dense<0.000000e+00> : vector<8x128xf32>
    %348 = tpu.matmul %338, %347, %cst_122 {dimension_numbers = #tpu.dot_dimension_numbers<[1], [0], [0], [1], [0, 0, 1, 1], [], []>} : vector<8x32xf32>, vector<32x128xf32>, vector<8x128xf32> -> vector<8x128xf32>
    %c0_123 = arith.constant 0 : index
    %c0_124 = arith.constant 0 : index
    %349 = vector.load %arg4[%c0_123, %c0_124] : memref<32x128xf32, #tpu.memory_space<vmem>>, vector<32x128xf32>
    %cst_125 = arith.constant dense<0.000000e+00> : vector<8x128xf32>
    %350 = tpu.matmul %321, %349, %cst_125 {dimension_numbers = #tpu.dot_dimension_numbers<[1], [0], [0], [1], [0, 0, 1, 1], [], []>} : vector<8x32xf32>, vector<32x128xf32>, vector<8x128xf32> -> vector<8x128xf32>
    %351 = arith.addf %348, %350 : vector<8x128xf32>
    %352 = arith.addf %351, %14 : vector<8x128xf32>
    %353 = arith.mulf %352, %8 : vector<8x128xf32>
    %354 = math.tanh %353 : vector<8x128xf32>
    %355 = arith.mulf %354, %8 : vector<8x128xf32>
    %356 = arith.addf %355, %11 : vector<8x128xf32>
    %357 = vector.extract_strided_slice %356 {offsets = [0, 0], sizes = [8, 32], strides = [1, 1]} : vector<8x128xf32> to vector<8x32xf32>
    %358 = vector.extract_strided_slice %356 {offsets = [0, 32], sizes = [8, 32], strides = [1, 1]} : vector<8x128xf32> to vector<8x32xf32>
    %359 = vector.extract_strided_slice %356 {offsets = [0, 64], sizes = [8, 32], strides = [1, 1]} : vector<8x128xf32> to vector<8x32xf32>
    %360 = vector.extract_strided_slice %356 {offsets = [0, 96], sizes = [8, 32], strides = [1, 1]} : vector<8x128xf32> to vector<8x32xf32>
    %361 = arith.mulf %358, %319 : vector<8x32xf32>
    %362 = arith.mulf %357, %359 : vector<8x32xf32>
    %363 = arith.addf %361, %362 : vector<8x32xf32>
    %364 = math.tanh %363 : vector<8x32xf32>
    %365 = arith.mulf %360, %364 : vector<8x32xf32>
    %366 = arith.index_cast %c7_i32_112 : i32 to index
    %c0_126 = arith.constant 0 : index
    %c0_127 = arith.constant 0 : index
    %367 = vector.load %arg6[%366, %c0_126, %c0_127] : memref<8x8x32xf32, #tpu.memory_space<vmem>>, vector<1x8x32xf32>
    %368 = vector.shape_cast %367 : vector<1x8x32xf32> to vector<8x32xf32>
    %369 = vector.shape_cast %365 : vector<8x32xf32> to vector<1x8x32xf32>
    tpu.vector_store %arg6[%366, %c0_126, %c0_127], %369 {strides = array<i32>} : memref<8x8x32xf32, #tpu.memory_space<vmem>>, vector<1x8x32xf32>,
    %c8_i32 = arith.constant 8 : i32
    return
  }
  func.func @transform_0(%arg0: i32) -> (i32, i32, i32) {
    %c0_i32 = arith.constant 0 : i32
    %c0_i32_0 = arith.constant 0 : i32
    %c0_i32_1 = arith.constant 0 : i32
    %c0_i32_2 = arith.constant 0 : i32
    return %c0_i32, %c0_i32_0, %c0_i32_1 : i32, i32, i32
  }
  func.func @transform_1(%arg0: i32) -> (i32, i32) {
    %c0_i32 = arith.constant 0 : i32
    %c0_i32_0 = arith.constant 0 : i32
    %c0_i32_1 = arith.constant 0 : i32
    return %c0_i32, %c0_i32_0 : i32, i32
  }
  func.func @transform_2(%arg0: i32) -> (i32, i32) {
    %c0_i32 = arith.constant 0 : i32
    %c0_i32_0 = arith.constant 0 : i32
    %c0_i32_1 = arith.constant 0 : i32
    return %c0_i32, %c0_i32_0 : i32, i32
  }
  func.func @transform_3(%arg0: i32) -> (i32, i32) {
    %c0_i32 = arith.constant 0 : i32
    %c0_i32_0 = arith.constant 0 : i32
    %c0_i32_1 = arith.constant 0 : i32
    return %c0_i32, %c0_i32_0 : i32, i32
  }
  func.func @transform_4(%arg0: i32) -> (i32, i32) {
    %c0_i32 = arith.constant 0 : i32
    %c0_i32_0 = arith.constant 0 : i32
    %c0_i32_1 = arith.constant 0 : i32
    return %c0_i32, %c0_i32_0 : i32, i32
  }
  func.func @transform_5(%arg0: i32) -> (i32, i32, i32) {
    %c0_i32 = arith.constant 0 : i32
    %c0_i32_0 = arith.constant 0 : i32
    %c0_i32_1 = arith.constant 0 : i32
    %c0_i32_2 = arith.constant 0 : i32
    return %c0_i32, %c0_i32_0, %c0_i32_1 : i32, i32, i32
  }
}

</mosaic_0001>

<llo_original>
// kernel: lstm_reg_forward.1
$region0: #{lstm_reg_forward.1}
  #allocation0 [shape = 'u32[]', space=smem, size = 0x4, offset = 0x4, fixed_abs, tag = 'smem constant byte address 0x4 - core index']
  #allocation1 [shape = 'u32[72,128]{1,0:T(1,128)}', space=vmem, size = 0x9000, scoped, tag = 'internal scratch']
  %s0 = inlined_call_operand.vmem [shape: f32[8,8,128], index: 0, kind: input, shape index: {}]
  %s1 = inlined_call_operand.vmem [shape: f32[32,128], index: 1, kind: input, shape index: {}]
  %s2 = inlined_call_operand.vmem [shape: f32[32,128], index: 2, kind: input, shape index: {}]
  %s3 = inlined_call_operand.vmem [shape: f32[32,128], index: 3, kind: input, shape index: {}]
  %s4 = inlined_call_operand.vmem [shape: f32[1,128], index: 4, kind: input, shape index: {}]
  %s5 = inlined_call_operand.vmem [shape: f32[8,8,32], index: 5, kind: output, shape index: {}]
  %s6 = sld [smem:[#allocation0]]
  $region30: #{lstm_reg_forward.1} parent=0
    _
  %s8 = ssub.s32 1, %s6
  %s9 = scalar_select 0, %s8, %s6
  // Predicated region
  $region2: #{lstm_reg_forward.1} parent=0 // pred_check
    _
  $region3: #{lstm_reg_forward.1} parent=0 // pred_check_branch
    %11 = sbr.rel (0) target = $region5
  $region4: #{lstm_reg_forward.1} parent=0 // pred_region
    _
  $region5: #{lstm_reg_forward.1} parent=0 // pred_fallthru
    _
  // Predicated region
  $region6: #{lstm_reg_forward.1} parent=0 // pred_check
    _
  $region7: #{lstm_reg_forward.1} parent=0 // pred_check_branch
    %13 = sbr.rel (0) target = $region9
  $region8: #{lstm_reg_forward.1} parent=0 // pred_region
    _
  $region9: #{lstm_reg_forward.1} parent=0 // pred_fallthru
    _
  // Predicated region
  $region10: #{lstm_reg_forward.1} parent=0 // pred_check
    _
  $region11: #{lstm_reg_forward.1} parent=0 // pred_check_branch
    %15 = sbr.rel (0) target = $region13
  $region12: #{lstm_reg_forward.1} parent=0 // pred_region
    _
  $region13: #{lstm_reg_forward.1} parent=0 // pred_fallthru
    _
  // Predicated region
  $region14: #{lstm_reg_forward.1} parent=0 // pred_check
    _
  $region15: #{lstm_reg_forward.1} parent=0 // pred_check_branch
    %17 = sbr.rel (0) target = $region17
  $region16: #{lstm_reg_forward.1} parent=0 // pred_region
    _
  $region17: #{lstm_reg_forward.1} parent=0 // pred_fallthru
    _
  // Predicated region
  $region18: #{lstm_reg_forward.1} parent=0 // pred_check
    _
  $region19: #{lstm_reg_forward.1} parent=0 // pred_check_branch
    %19 = sbr.rel (0) target = $region21
  $region20: #{lstm_reg_forward.1} parent=0 // pred_region
    _
  $region21: #{lstm_reg_forward.1} parent=0 // pred_fallthru
    _
  %v20 = vlaneseq
  %v21 = vand.u32 %v20, 127
  %vm22 = vcmp.ge.s32.totalorder %v21, 64
  %vm23 = vcmp.lt.s32.totalorder %v21, 96
  %vm24 = vmand %vm22, %vm23
  %v25 = vsel %vm24, 1.0, 0.5
  %v26 = vsel %vm24, 0.0, 0.5
  %v27 = vld [vmem:[%s4] sm:$0x1]
  %v29 = vperm.slane %v27, 0
  %v31 = vld [vmem:[%s0] sm:$0xff]
  %v32 = vmul.f32 %v31, %v25
  %v33 = vtanh.pop %v32
  %v34 = vmul.f32 %v33, %v25
  %v35 = vadd.f32 %v34, %v26
  %v36 = vmul.f32 %v35, 0.0
  %38 = vrot.lane.b32.xlu0 %v35, 64
  %v39 = vpop.permute.xlu0 %38
  %v41 = vmul.f32 %v35, %v39
  %43 = vrot.lane.b32.xlu0 %v41, 32
  %v44 = vpop.permute.xlu0 %43
  %v46 = vadd.f32 %v36, %v44
  %v47 = vtanh.pop %v46
  %49 = vrot.lane.b32.xlu0 %v47, 64
  %v50 = vpop.permute.xlu0 %49
  %v52 = vmul.f32 %v35, %v50
  %s53 = scalar_lea.vmem %s0, 8
  %v54 = vld [vmem:[%s53] sm:$0xff]
  %v55 = vld [vmem:[%s1] sm:$0xff]
  %v56 = vld [vmem:[%s1 + $0x8] sm:$0xff]
  %v57 = vld [vmem:[%s1 + $0x10] sm:$0xff]
  %v58 = vld [vmem:[%s1 + $0x18] sm:$0xff]
  %60 = vrot.lane.b32.xlu0 %v52, 32
  %v61 = vpop.permute.xlu0 %60
  %vm62 = vcmask 261120
  %v63 = vsel %vm62, %v61, 0
  %65 = vmatpush.msra.mxu0 0.0
  %66 = vmatpush.msra.mxu0 0.0
  %67 = vmatpush.msra.mxu0 0.0
  %68 = vmatpush.msra.mxu0 0.0
  %69 = vmatpush.msra.mxu0 0.0
  %70 = vmatpush.msra.mxu0 0.0
  %71 = vmatpush.msra.mxu0 0.0
  %72 = vmatpush.msra.mxu0 0.0
  %73 = vmatpush.msra.mxu0 0.0
  %74 = vmatpush.msra.mxu0 0.0
  %75 = vmatpush.msra.mxu0 0.0
  %76 = vmatpush.msra.mxu0 0.0
  %77 = vmatpush.msra.mxu0 %v58
  %78 = vmatpush.msra.mxu0 %v57
  %79 = vmatpush.msra.mxu0 %v56
  %80 = vmatpush.msra.mxu0 %v55
  %81 = vmatmul.f32.gmra.mxu0 %v63
  %v82 = vpop.f32.mrf.mxu0
  %v83 = vadd.f32 0.0, %v82
  %84 = vdwg.mxu0
  %v85 = vadd.f32 %v54, %v83
  %v86 = vld [vmem:[%s2] sm:$0xff]
  %v87 = vld [vmem:[%s2 + $0x8] sm:$0xff]
  %v88 = vld [vmem:[%s2 + $0x10] sm:$0xff]
  %v89 = vld [vmem:[%s2 + $0x18] sm:$0xff]
  %v90 = vld [vmem:[%s3] sm:$0xff]
  %v91 = vld [vmem:[%s3 + $0x8] sm:$0xff]
  %v92 = vld [vmem:[%s3 + $0x10] sm:$0xff]
  %v93 = vld [vmem:[%s3 + $0x18] sm:$0xff]
  %v95 = vsel %vm62, 0.0, 0
  %97 = vmatpush.msra.mxu0 0.0
  %98 = vmatpush.msra.mxu0 0.0
  %99 = vmatpush.msra.mxu0 0.0
  %100 = vmatpush.msra.mxu0 0.0
  %101 = vmatpush.msra.mxu0 0.0
  %102 = vmatpush.msra.mxu0 0.0
  %103 = vmatpush.msra.mxu0 0.0
  %104 = vmatpush.msra.mxu0 0.0
  %105 = vmatpush.msra.mxu0 0.0
  %106 = vmatpush.msra.mxu0 0.0
  %107 = vmatpush.msra.mxu0 0.0
  %108 = vmatpush.msra.mxu0 0.0
  %109 = vmatpush.msra.mxu0 %v93
  %110 = vmatpush.msra.mxu0 %v92
  %111 = vmatpush.msra.mxu0 %v91
  %112 = vmatpush.msra.mxu0 %v90
  %113 = vmatmul.f32.gmra.mxu0 %v95
  %v114 = vpop.f32.mrf.mxu0
  %v115 = vadd.f32 0.0, %v114
  %116 = vdwg.mxu0
  %117 = vmatpush.msra.mxu0 0.0
  %118 = vmatpush.msra.mxu0 0.0
  %119 = vmatpush.msra.mxu0 0.0
  %120 = vmatpush.msra.mxu0 0.0
  %121 = vmatpush.msra.mxu0 0.0
  %122 = vmatpush.msra.mxu0 0.0
  %123 = vmatpush.msra.mxu0 0.0
  %124 = vmatpush.msra.mxu0 0.0
  %125 = vmatpush.msra.mxu0 0.0
  %126 = vmatpush.msra.mxu0 0.0
  %127 = vmatpush.msra.mxu0 0.0
  %128 = vmatpush.msra.mxu0 0.0
  %129 = vmatpush.msra.mxu0 %v89
  %130 = vmatpush.msra.mxu0 %v88
  %131 = vmatpush.msra.mxu0 %v87
  %132 = vmatpush.msra.mxu0 %v86
  %133 = vmatmul.f32.gmra.mxu0 %v63
  %v134 = vpop.f32.mrf.mxu0
  %v135 = vadd.f32 %v115, %v134
  %136 = vdwg.mxu0
  %v137 = vadd.f32 %v135, %v29
  %v138 = vmul.f32 %v137, %v25
  %v139 = vtanh.pop %v138
  %v140 = vmul.f32 %v139, %v25
  %v141 = vadd.f32 %v140, %v26
  %v142 = vmul.f32 %v141, 0.0
  %144 = vrot.lane.b32.xlu0 %v141, 64
  %v145 = vpop.permute.xlu0 %144
  %v147 = vmul.f32 %v141, %v145
  %149 = vrot.lane.b32.xlu0 %v147, 32
  %v150 = vpop.permute.xlu0 %149
  %v152 = vadd.f32 %v142, %v150
  %v153 = vtanh.pop %v152
  %155 = vrot.lane.b32.xlu0 %v153, 64
  %v156 = vpop.permute.xlu0 %155
  %v158 = vmul.f32 %v141, %v156
  %160 = vrot.lane.b32.xlu0 %v158, 32
  %v161 = vpop.permute.xlu0 %160
  %163 = vst.msk [vmem:[%s5] sm:$0xff] %vm62, %v161
  %v164 = vmul.f32 %v85, %v25
  %v165 = vtanh.pop %v164
  %v166 = vmul.f32 %v165, %v25
  %v167 = vadd.f32 %v166, %v26
  %v168 = vmul.f32 %v167, %v46
  %170 = vrot.lane.b32.xlu0 %v167, 64
  %v171 = vpop.permute.xlu0 %170
  %v173 = vmul.f32 %v167, %v171
  %175 = vrot.lane.b32.xlu0 %v173, 32
  %v176 = vpop.permute.xlu0 %175
  %v178 = vadd.f32 %v168, %v176
  %v179 = vtanh.pop %v178
  %181 = vrot.lane.b32.xlu0 %v179, 64
  %v182 = vpop.permute.xlu0 %181
  %v184 = vmul.f32 %v167, %v182
  %s185 = scalar_lea.vmem %s0, 16
  %v186 = vld [vmem:[%s185] sm:$0xff]
  %v187 = vld [vmem:[%s1] sm:$0xff]
  %v188 = vld [vmem:[%s1 + $0x8] sm:$0xff]
  %v189 = vld [vmem:[%s1 + $0x10] sm:$0xff]
  %v190 = vld [vmem:[%s1 + $0x18] sm:$0xff]
  %192 = vrot.lane.b32.xlu0 %v184, 32
  %v193 = vpop.permute.xlu0 %192
  %v194 = vsel %vm62, %v193, 0
  %196 = vmatpush.msra.mxu0 0.0
  %197 = vmatpush.msra.mxu0 0.0
  %198 = vmatpush.msra.mxu0 0.0
  %199 = vmatpush.msra.mxu0 0.0
  %200 = vmatpush.msra.mxu0 0.0
  %201 = vmatpush.msra.mxu0 0.0
  %202 = vmatpush.msra.mxu0 0.0
  %203 = vmatpush.msra.mxu0 0.0
  %204 = vmatpush.msra.mxu0 0.0
  %205 = vmatpush.msra.mxu0 0.0
  %206 = vmatpush.msra.mxu0 0.0
  %207 = vmatpush.msra.mxu0 0.0
  %208 = vmatpush.msra.mxu0 %v190
  %209 = vmatpush.msra.mxu0 %v189
  %210 = vmatpush.msra.mxu0 %v188
  %211 = vmatpush.msra.mxu0 %v187
  %212 = vmatmul.f32.gmra.mxu0 %v194
  %v213 = vpop.f32.mrf.mxu0
  %v214 = vadd.f32 0.0, %v213
  %215 = vdwg.mxu0
  %v216 = vadd.f32 %v186, %v214
  %v217 = vld [vmem:[%s2] sm:$0xff]
  %v218 = vld [vmem:[%s2 + $0x8] sm:$0xff]
  %v219 = vld [vmem:[%s2 + $0x10] sm:$0xff]
  %v220 = vld [vmem:[%s2 + $0x18] sm:$0xff]
  %v221 = vld [vmem:[%s3] sm:$0xff]
  %v222 = vld [vmem:[%s3 + $0x8] sm:$0xff]
  %v223 = vld [vmem:[%s3 + $0x10] sm:$0xff]
  %v224 = vld [vmem:[%s3 + $0x18] sm:$0xff]
  %v225 = vsel %vm62, %v161, 0
  %227 = vmatpush.msra.mxu0 0.0
  %228 = vmatpush.msra.mxu0 0.0
  %229 = vmatpush.msra.mxu0 0.0
  %230 = vmatpush.msra.mxu0 0.0
  %231 = vmatpush.msra.mxu0 0.0
  %232 = vmatpush.msra.mxu0 0.0
  %233 = vmatpush.msra.mxu0 0.0
  %234 = vmatpush.msra.mxu0 0.0
  %235 = vmatpush.msra.mxu0 0.0
  %236 = vmatpush.msra.mxu0 0.0
  %237 = vmatpush.msra.mxu0 0.0
  %238 = vmatpush.msra.mxu0 0.0
  %239 = vmatpush.msra.mxu0 %v224
  %240 = vmatpush.msra.mxu0 %v223
  %241 = vmatpush.msra.mxu0 %v222
  %242 = vmatpush.msra.mxu0 %v221
  %243 = vmatmul.f32.gmra.mxu0 %v225
  %v244 = vpop.f32.mrf.mxu0
  %v245 = vadd.f32 0.0, %v244
  %246 = vdwg.mxu0
  %247 = vmatpush.msra.mxu0 0.0
  %248 = vmatpush.msra.mxu0 0.0
  %249 = vmatpush.msra.mxu0 0.0
  %250 = vmatpush.msra.mxu0 0.0
  %251 = vmatpush.msra.mxu0 0.0
  %252 = vmatpush.msra.mxu0 0.0
  %253 = vmatpush.msra.mxu0 0.0
  %254 = vmatpush.msra.mxu0 0.0
  %255 = vmatpush.msra.mxu0 0.0
  %256 = vmatpush.msra.mxu0 0.0
  %257 = vmatpush.msra.mxu0 0.0
  %258 = vmatpush.msra.mxu0 0.0
  %259 = vmatpush.msra.mxu0 %v220
  %260 = vmatpush.msra.mxu0 %v219
  %261 = vmatpush.msra.mxu0 %v218
  %262 = vmatpush.msra.mxu0 %v217
  %263 = vmatmul.f32.gmra.mxu0 %v194
  %v264 = vpop.f32.mrf.mxu0
  %v265 = vadd.f32 %v245, %v264
  %266 = vdwg.mxu0
  %v267 = vadd.f32 %v265, %v29
  %v268 = vmul.f32 %v267, %v25
  %v269 = vtanh.pop %v268
  %v270 = vmul.f32 %v269, %v25
  %v271 = vadd.f32 %v270, %v26
  %v272 = vmul.f32 %v271, %v152
  %274 = vrot.lane.b32.xlu0 %v271, 64
  %v275 = vpop.permute.xlu0 %274
  %v277 = vmul.f32 %v271, %v275
  %279 = vrot.lane.b32.xlu0 %v277, 32
  %v280 = vpop.permute.xlu0 %279
  %v282 = vadd.f32 %v272, %v280
  %v283 = vtanh.pop %v282
  %285 = vrot.lane.b32.xlu0 %v283, 64
  %v286 = vpop.permute.xlu0 %285
  %v288 = vmul.f32 %v271, %v286
  %290 = vrot.lane.b32.xlu0 %v288, 32
  %v291 = vpop.permute.xlu0 %290
  %s293 = scalar_lea.vmem %s5, 8
  %294 = vst.msk [vmem:[%s293] sm:$0xff] %vm62, %v291
  %v295 = vmul.f32 %v216, %v25
  %v296 = vtanh.pop %v295
  %v297 = vmul.f32 %v296, %v25
  %v298 = vadd.f32 %v297, %v26
  %v299 = vmul.f32 %v298, %v178
  %301 = vrot.lane.b32.xlu0 %v298, 64
  %v302 = vpop.permute.xlu0 %301
  %v304 = vmul.f32 %v298, %v302
  %306 = vrot.lane.b32.xlu0 %v304, 32
  %v307 = vpop.permute.xlu0 %306
  %v309 = vadd.f32 %v299, %v307
  %v310 = vtanh.pop %v309
  %312 = vrot.lane.b32.xlu0 %v310, 64
  %v313 = vpop.permute.xlu0 %312
  %v315 = vmul.f32 %v298, %v313
  %s316 = scalar_lea.vmem %s0, 24
  %v317 = vld [vmem:[%s316] sm:$0xff]
  %v318 = vld [vmem:[%s1] sm:$0xff]
  %v319 = vld [vmem:[%s1 + $0x8] sm:$0xff]
  %v320 = vld [vmem:[%s1 + $0x10] sm:$0xff]
  %v321 = vld [vmem:[%s1 + $0x18] sm:$0xff]
  %323 = vrot.lane.b32.xlu0 %v315, 32
  %v324 = vpop.permute.xlu0 %323
  %v325 = vsel %vm62, %v324, 0
  %327 = vmatpush.msra.mxu0 0.0
  %328 = vmatpush.msra.mxu0 0.0
  %329 = vmatpush.msra.mxu0 0.0
  %330 = vmatpush.msra.mxu0 0.0
  %331 = vmatpush.msra.mxu0 0.0
  %332 = vmatpush.msra.mxu0 0.0
  %333 = vmatpush.msra.mxu0 0.0
  %334 = vmatpush.msra.mxu0 0.0
  %335 = vmatpush.msra.mxu0 0.0
  %336 = vmatpush.msra.mxu0 0.0
  %337 = vmatpush.msra.mxu0 0.0
  %338 = vmatpush.msra.mxu0 0.0
  %339 = vmatpush.msra.mxu0 %v321
  %340 = vmatpush.msra.mxu0 %v320
  %341 = vmatpush.msra.mxu0 %v319
  %342 = vmatpush.msra.mxu0 %v318
  %343 = vmatmul.f32.gmra.mxu0 %v325
  %v344 = vpop.f32.mrf.mxu0
  %v345 = vadd.f32 0.0, %v344
  %346 = vdwg.mxu0
  %v347 = vadd.f32 %v317, %v345
  %v348 = vld [vmem:[%s2] sm:$0xff]
  %v349 = vld [vmem:[%s2 + $0x8] sm:$0xff]
  %v350 = vld [vmem:[%s2 + $0x10] sm:$0xff]
  %v351 = vld [vmem:[%s2 + $0x18] sm:$0xff]
  %v352 = vld [vmem:[%s3] sm:$0xff]
  %v353 = vld [vmem:[%s3 + $0x8] sm:$0xff]
  %v354 = vld [vmem:[%s3 + $0x10] sm:$0xff]
  %v355 = vld [vmem:[%s3 + $0x18] sm:$0xff]
  %v356 = vsel %vm62, %v291, 0
  %358 = vmatpush.msra.mxu0 0.0
  %359 = vmatpush.msra.mxu0 0.0
  %360 = vmatpush.msra.mxu0 0.0
  %361 = vmatpush.msra.mxu0 0.0
  %362 = vmatpush.msra.mxu0 0.0
  %363 = vmatpush.msra.mxu0 0.0
  %364 = vmatpush.msra.mxu0 0.0
  %365 = vmatpush.msra.mxu0 0.0
  %366 = vmatpush.msra.mxu0 0.0
  %367 = vmatpush.msra.mxu0 0.0
  %368 = vmatpush.msra.mxu0 0.0
  %369 = vmatpush.msra.mxu0 0.0
  %370 = vmatpush.msra.mxu0 %v355
  %371 = vmatpush.msra.mxu0 %v354
  %372 = vmatpush.msra.mxu0 %v353
  %373 = vmatpush.msra.mxu0 %v352
  %374 = vmatmul.f32.gmra.mxu0 %v356
  %v375 = vpop.f32.mrf.mxu0
  %v376 = vadd.f32 0.0, %v375
  %377 = vdwg.mxu0
  %378 = vmatpush.msra.mxu0 0.0
  %379 = vmatpush.msra.mxu0 0.0
  %380 = vmatpush.msra.mxu0 0.0
  %381 = vmatpush.msra.mxu0 0.0
  %382 = vmatpush.msra.mxu0 0.0
  %383 = vmatpush.msra.mxu0 0.0
  %384 = vmatpush.msra.mxu0 0.0
  %385 = vmatpush.msra.mxu0 0.0
  %386 = vmatpush.msra.mxu0 0.0
  %387 = vmatpush.msra.mxu0 0.0
  %388 = vmatpush.msra.mxu0 0.0
  %389 = vmatpush.msra.mxu0 0.0
  %390 = vmatpush.msra.mxu0 %v351
  %391 = vmatpush.msra.mxu0 %v350
  %392 = vmatpush.msra.mxu0 %v349
  %393 = vmatpush.msra.mxu0 %v348
  %394 = vmatmul.f32.gmra.mxu0 %v325
  %v395 = vpop.f32.mrf.mxu0
  %v396 = vadd.f32 %v376, %v395
  %397 = vdwg.mxu0
  %v398 = vadd.f32 %v396, %v29
  %v399 = vmul.f32 %v398, %v25
  %v400 = vtanh.pop %v399
  %v401 = vmul.f32 %v400, %v25
  %v402 = vadd.f32 %v401, %v26
  %v403 = vmul.f32 %v402, %v282
  %405 = vrot.lane.b32.xlu0 %v402, 64
  %v406 = vpop.permute.xlu0 %405
  %v408 = vmul.f32 %v402, %v406
  %410 = vrot.lane.b32.xlu0 %v408, 32
  %v411 = vpop.permute.xlu0 %410
  %v413 = vadd.f32 %v403, %v411
  %v414 = vtanh.pop %v413
  %416 = vrot.lane.b32.xlu0 %v414, 64
  %v417 = vpop.permute.xlu0 %416
  %v419 = vmul.f32 %v402, %v417
  %421 = vrot.lane.b32.xlu0 %v419, 32
  %v422 = vpop.permute.xlu0 %421
  %s424 = scalar_lea.vmem %s5, 16
  %425 = vst.msk [vmem:[%s424] sm:$0xff] %vm62, %v422
  %v426 = vmul.f32 %v347, %v25
  %v427 = vtanh.pop %v426
  %v428 = vmul.f32 %v427, %v25
  %v429 = vadd.f32 %v428, %v26
  %v430 = vmul.f32 %v429, %v309
  %432 = vrot.lane.b32.xlu0 %v429, 64
  %v433 = vpop.permute.xlu0 %432
  %v435 = vmul.f32 %v429, %v433
  %437 = vrot.lane.b32.xlu0 %v435, 32
  %v438 = vpop.permute.xlu0 %437
  %v440 = vadd.f32 %v430, %v438
  %v441 = vtanh.pop %v440
  %443 = vrot.lane.b32.xlu0 %v441, 64
  %v444 = vpop.permute.xlu0 %443
  %v446 = vmul.f32 %v429, %v444
  %s447 = scalar_lea.vmem %s0, 32
  %v448 = vld [vmem:[%s447] sm:$0xff]
  %v449 = vld [vmem:[%s1] sm:$0xff]
  %v450 = vld [vmem:[%s1 + $0x8] sm:$0xff]
  %v451 = vld [vmem:[%s1 + $0x10] sm:$0xff]
  %v452 = vld [vmem:[%s1 + $0x18] sm:$0xff]
  %454 = vrot.lane.b32.xlu0 %v446, 32
  %v455 = vpop.permute.xlu0 %454
  %v456 = vsel %vm62, %v455, 0
  %458 = vmatpush.msra.mxu0 0.0
  %459 = vmatpush.msra.mxu0 0.0
  %460 = vmatpush.msra.mxu0 0.0
  %461 = vmatpush.msra.mxu0 0.0
  %462 = vmatpush.msra.mxu0 0.0
  %463 = vmatpush.msra.mxu0 0.0
  %464 = vmatpush.msra.mxu0 0.0
  %465 = vmatpush.msra.mxu0 0.0
  %466 = vmatpush.msra.mxu0 0.0
  %467 = vmatpush.msra.mxu0 0.0
  %468 = vmatpush.msra.mxu0 0.0
  %469 = vmatpush.msra.mxu0 0.0
  %470 = vmatpush.msra.mxu0 %v452
  %471 = vmatpush.msra.mxu0 %v451
  %472 = vmatpush.msra.mxu0 %v450
  %473 = vmatpush.msra.mxu0 %v449
  %474 = vmatmul.f32.gmra.mxu0 %v456
  %v475 = vpop.f32.mrf.mxu0
  %v476 = vadd.f32 0.0, %v475
  %477 = vdwg.mxu0
  %v478 = vadd.f32 %v448, %v476
  %v479 = vld [vmem:[%s2] sm:$0xff]
  %v480 = vld [vmem:[%s2 + $0x8] sm:$0xff]
  %v481 = vld [vmem:[%s2 + $0x10] sm:$0xff]
  %v482 = vld [vmem:[%s2 + $0x18] sm:$0xff]
  %v483 = vld [vmem:[%s3] sm:$0xff]
  %v484 = vld [vmem:[%s3 + $0x8] sm:$0xff]
  %v485 = vld [vmem:[%s3 + $0x10] sm:$0xff]
  %v486 = vld [vmem:[%s3 + $0x18] sm:$0xff]
  %v487 = vsel %vm62, %v422, 0
  %489 = vmatpush.msra.mxu0 0.0
  %490 = vmatpush.msra.mxu0 0.0
  %491 = vmatpush.msra.mxu0 0.0
  %492 = vmatpush.msra.mxu0 0.0
  %493 = vmatpush.msra.mxu0 0.0
  %494 = vmatpush.msra.mxu0 0.0
  %495 = vmatpush.msra.mxu0 0.0
  %496 = vmatpush.msra.mxu0 0.0
  %497 = vmatpush.msra.mxu0 0.0
  %498 = vmatpush.msra.mxu0 0.0
  %499 = vmatpush.msra.mxu0 0.0
  %500 = vmatpush.msra.mxu0 0.0
  %501 = vmatpush.msra.mxu0 %v486
  %502 = vmatpush.msra.mxu0 %v485
  %503 = vmatpush.msra.mxu0 %v484
  %504 = vmatpush.msra.mxu0 %v483
  %505 = vmatmul.f32.gmra.mxu0 %v487
  %v506 = vpop.f32.mrf.mxu0
  %v507 = vadd.f32 0.0, %v506
  %508 = vdwg.mxu0
  %509 = vmatpush.msra.mxu0 0.0
  %510 = vmatpush.msra.mxu0 0.0
  %511 = vmatpush.msra.mxu0 0.0
  %512 = vmatpush.msra.mxu0 0.0
  %513 = vmatpush.msra.mxu0 0.0
  %514 = vmatpush.msra.mxu0 0.0
  %515 = vmatpush.msra.mxu0 0.0
  %516 = vmatpush.msra.mxu0 0.0
  %517 = vmatpush.msra.mxu0 0.0
  %518 = vmatpush.msra.mxu0 0.0
  %519 = vmatpush.msra.mxu0 0.0
  %520 = vmatpush.msra.mxu0 0.0
  %521 = vmatpush.msra.mxu0 %v482
  %522 = vmatpush.msra.mxu0 %v481
  %523 = vmatpush.msra.mxu0 %v480
  %524 = vmatpush.msra.mxu0 %v479
  %525 = vmatmul.f32.gmra.mxu0 %v456
  %v526 = vpop.f32.mrf.mxu0
  %v527 = vadd.f32 %v507, %v526
  %528 = vdwg.mxu0
  %v529 = vadd.f32 %v527, %v29
  %v530 = vmul.f32 %v529, %v25
  %v531 = vtanh.pop %v530
  %v532 = vmul.f32 %v531, %v25
  %v533 = vadd.f32 %v532, %v26
  %v534 = vmul.f32 %v533, %v413
  %536 = vrot.lane.b32.xlu0 %v533, 64
  %v537 = vpop.permute.xlu0 %536
  %v539 = vmul.f32 %v533, %v537
  %541 = vrot.lane.b32.xlu0 %v539, 32
  %v542 = vpop.permute.xlu0 %541
  %v544 = vadd.f32 %v534, %v542
  %v545 = vtanh.pop %v544
  %547 = vrot.lane.b32.xlu0 %v545, 64
  %v548 = vpop.permute.xlu0 %547
  %v550 = vmul.f32 %v533, %v548
  %552 = vrot.lane.b32.xlu0 %v550, 32
  %v553 = vpop.permute.xlu0 %552
  %s555 = scalar_lea.vmem %s5, 24
  %556 = vst.msk [vmem:[%s555] sm:$0xff] %vm62, %v553
  %v557 = vmul.f32 %v478, %v25
  %v558 = vtanh.pop %v557
  %v559 = vmul.f32 %v558, %v25
  %v560 = vadd.f32 %v559, %v26
  %v561 = vmul.f32 %v560, %v440
  %563 = vrot.lane.b32.xlu0 %v560, 64
  %v564 = vpop.permute.xlu0 %563
  %v566 = vmul.f32 %v560, %v564
  %568 = vrot.lane.b32.xlu0 %v566, 32
  %v569 = vpop.permute.xlu0 %568
  %v571 = vadd.f32 %v561, %v569
  %v572 = vtanh.pop %v571
  %574 = vrot.lane.b32.xlu0 %v572, 64
  %v575 = vpop.permute.xlu0 %574
  %v577 = vmul.f32 %v560, %v575
  %s578 = scalar_lea.vmem %s0, 40
  %v579 = vld [vmem:[%s578] sm:$0xff]
  %v580 = vld [vmem:[%s1] sm:$0xff]
  %v581 = vld [vmem:[%s1 + $0x8] sm:$0xff]
  %v582 = vld [vmem:[%s1 + $0x10] sm:$0xff]
  %v583 = vld [vmem:[%s1 + $0x18] sm:$0xff]
  %585 = vrot.lane.b32.xlu0 %v577, 32
  %v586 = vpop.permute.xlu0 %585
  %v587 = vsel %vm62, %v586, 0
  %589 = vmatpush.msra.mxu0 0.0
  %590 = vmatpush.msra.mxu0 0.0
  %591 = vmatpush.msra.mxu0 0.0
  %592 = vmatpush.msra.mxu0 0.0
  %593 = vmatpush.msra.mxu0 0.0
  %594 = vmatpush.msra.mxu0 0.0
  %595 = vmatpush.msra.mxu0 0.0
  %596 = vmatpush.msra.mxu0 0.0
  %597 = vmatpush.msra.mxu0 0.0
  %598 = vmatpush.msra.mxu0 0.0
  %599 = vmatpush.msra.mxu0 0.0
  %600 = vmatpush.msra.mxu0 0.0
  %601 = vmatpush.msra.mxu0 %v583
  %602 = vmatpush.msra.mxu0 %v582
  %603 = vmatpush.msra.mxu0 %v581
  %604 = vmatpush.msra.mxu0 %v580
  %605 = vmatmul.f32.gmra.mxu0 %v587
  %v606 = vpop.f32.mrf.mxu0
  %v607 = vadd.f32 0.0, %v606
  %608 = vdwg.mxu0
  %v609 = vadd.f32 %v579, %v607
  %v610 = vld [vmem:[%s2] sm:$0xff]
  %v611 = vld [vmem:[%s2 + $0x8] sm:$0xff]
  %v612 = vld [vmem:[%s2 + $0x10] sm:$0xff]
  %v613 = vld [vmem:[%s2 + $0x18] sm:$0xff]
  %v614 = vld [vmem:[%s3] sm:$0xff]
  %v615 = vld [vmem:[%s3 + $0x8] sm:$0xff]
  %v616 = vld [vmem:[%s3 + $0x10] sm:$0xff]
  %v617 = vld [vmem:[%s3 + $0x18] sm:$0xff]
  %v618 = vsel %vm62, %v553, 0
  %620 = vmatpush.msra.mxu0 0.0
  %621 = vmatpush.msra.mxu0 0.0
  %622 = vmatpush.msra.mxu0 0.0
  %623 = vmatpush.msra.mxu0 0.0
  %624 = vmatpush.msra.mxu0 0.0
  %625 = vmatpush.msra.mxu0 0.0
  %626 = vmatpush.msra.mxu0 0.0
  %627 = vmatpush.msra.mxu0 0.0
  %628 = vmatpush.msra.mxu0 0.0
  %629 = vmatpush.msra.mxu0 0.0
  %630 = vmatpush.msra.mxu0 0.0
  %631 = vmatpush.msra.mxu0 0.0
  %632 = vmatpush.msra.mxu0 %v617
  %633 = vmatpush.msra.mxu0 %v616
  %634 = vmatpush.msra.mxu0 %v615
  %635 = vmatpush.msra.mxu0 %v614
  %636 = vmatmul.f32.gmra.mxu0 %v618
  %v637 = vpop.f32.mrf.mxu0
  %v638 = vadd.f32 0.0, %v637
  %639 = vdwg.mxu0
  %640 = vmatpush.msra.mxu0 0.0
  %641 = vmatpush.msra.mxu0 0.0
  %642 = vmatpush.msra.mxu0 0.0
  %643 = vmatpush.msra.mxu0 0.0
  %644 = vmatpush.msra.mxu0 0.0
  %645 = vmatpush.msra.mxu0 0.0
  %646 = vmatpush.msra.mxu0 0.0
  %647 = vmatpush.msra.mxu0 0.0
  %648 = vmatpush.msra.mxu0 0.0
  %649 = vmatpush.msra.mxu0 0.0
  %650 = vmatpush.msra.mxu0 0.0
  %651 = vmatpush.msra.mxu0 0.0
  %652 = vmatpush.msra.mxu0 %v613
  %653 = vmatpush.msra.mxu0 %v612
  %654 = vmatpush.msra.mxu0 %v611
  %655 = vmatpush.msra.mxu0 %v610
  %656 = vmatmul.f32.gmra.mxu0 %v587
  %v657 = vpop.f32.mrf.mxu0
  %v658 = vadd.f32 %v638, %v657
  %659 = vdwg.mxu0
  %v660 = vadd.f32 %v658, %v29
  %v661 = vmul.f32 %v660, %v25
  %v662 = vtanh.pop %v661
  %v663 = vmul.f32 %v662, %v25
  %v664 = vadd.f32 %v663, %v26
  %v665 = vmul.f32 %v664, %v544
  %667 = vrot.lane.b32.xlu0 %v664, 64
  %v668 = vpop.permute.xlu0 %667
  %v670 = vmul.f32 %v664, %v668
  %672 = vrot.lane.b32.xlu0 %v670, 32
  %v673 = vpop.permute.xlu0 %672
  %v675 = vadd.f32 %v665, %v673
  %v676 = vtanh.pop %v675
  %678 = vrot.lane.b32.xlu0 %v676, 64
  %v679 = vpop.permute.xlu0 %678
  %v681 = vmul.f32 %v664, %v679
  %683 = vrot.lane.b32.xlu0 %v681, 32
  %v684 = vpop.permute.xlu0 %683
  %s686 = scalar_lea.vmem %s5, 32
  %687 = vst.msk [vmem:[%s686] sm:$0xff] %vm62, %v684
  %v688 = vmul.f32 %v609, %v25
  %v689 = vtanh.pop %v688
  %v690 = vmul.f32 %v689, %v25
  %v691 = vadd.f32 %v690, %v26
  %v692 = vmul.f32 %v691, %v571
  %694 = vrot.lane.b32.xlu0 %v691, 64
  %v695 = vpop.permute.xlu0 %694
  %v697 = vmul.f32 %v691, %v695
  %699 = vrot.lane.b32.xlu0 %v697, 32
  %v700 = vpop.permute.xlu0 %699
  %v702 = vadd.f32 %v692, %v700
  %v703 = vtanh.pop %v702
  %705 = vrot.lane.b32.xlu0 %v703, 64
  %v706 = vpop.permute.xlu0 %705
  %v708 = vmul.f32 %v691, %v706
  %s709 = scalar_lea.vmem %s0, 48
  %v710 = vld [vmem:[%s709] sm:$0xff]
  %v711 = vld [vmem:[%s1] sm:$0xff]
  %v712 = vld [vmem:[%s1 + $0x8] sm:$0xff]
  %v713 = vld [vmem:[%s1 + $0x10] sm:$0xff]
  %v714 = vld [vmem:[%s1 + $0x18] sm:$0xff]
  %716 = vrot.lane.b32.xlu0 %v708, 32
  %v717 = vpop.permute.xlu0 %716
  %v718 = vsel %vm62, %v717, 0
  %720 = vmatpush.msra.mxu0 0.0
  %721 = vmatpush.msra.mxu0 0.0
  %722 = vmatpush.msra.mxu0 0.0
  %723 = vmatpush.msra.mxu0 0.0
  %724 = vmatpush.msra.mxu0 0.0
  %725 = vmatpush.msra.mxu0 0.0
  %726 = vmatpush.msra.mxu0 0.0
  %727 = vmatpush.msra.mxu0 0.0
  %728 = vmatpush.msra.mxu0 0.0
  %729 = vmatpush.msra.mxu0 0.0
  %730 = vmatpush.msra.mxu0 0.0
  %731 = vmatpush.msra.mxu0 0.0
  %732 = vmatpush.msra.mxu0 %v714
  %733 = vmatpush.msra.mxu0 %v713
  %734 = vmatpush.msra.mxu0 %v712
  %735 = vmatpush.msra.mxu0 %v711
  %736 = vmatmul.f32.gmra.mxu0 %v718
  %v737 = vpop.f32.mrf.mxu0
  %v738 = vadd.f32 0.0, %v737
  %739 = vdwg.mxu0
  %v740 = vadd.f32 %v710, %v738
  %v741 = vld [vmem:[%s2] sm:$0xff]
  %v742 = vld [vmem:[%s2 + $0x8] sm:$0xff]
  %v743 = vld [vmem:[%s2 + $0x10] sm:$0xff]
  %v744 = vld [vmem:[%s2 + $0x18] sm:$0xff]
  %v745 = vld [vmem:[%s3] sm:$0xff]
  %v746 = vld [vmem:[%s3 + $0x8] sm:$0xff]
  %v747 = vld [vmem:[%s3 + $0x10] sm:$0xff]
  %v748 = vld [vmem:[%s3 + $0x18] sm:$0xff]
  %v749 = vsel %vm62, %v684, 0
  %751 = vmatpush.msra.mxu0 0.0
  %752 = vmatpush.msra.mxu0 0.0
  %753 = vmatpush.msra.mxu0 0.0
  %754 = vmatpush.msra.mxu0 0.0
  %755 = vmatpush.msra.mxu0 0.0
  %756 = vmatpush.msra.mxu0 0.0
  %757 = vmatpush.msra.mxu0 0.0
  %758 = vmatpush.msra.mxu0 0.0
  %759 = vmatpush.msra.mxu0 0.0
  %760 = vmatpush.msra.mxu0 0.0
  %761 = vmatpush.msra.mxu0 0.0
  %762 = vmatpush.msra.mxu0 0.0
  %763 = vmatpush.msra.mxu0 %v748
  %764 = vmatpush.msra.mxu0 %v747
  %765 = vmatpush.msra.mxu0 %v746
  %766 = vmatpush.msra.mxu0 %v745
  %767 = vmatmul.f32.gmra.mxu0 %v749
  %v768 = vpop.f32.mrf.mxu0
  %v769 = vadd.f32 0.0, %v768
  %770 = vdwg.mxu0
  %771 = vmatpush.msra.mxu0 0.0
  %772 = vmatpush.msra.mxu0 0.0
  %773 = vmatpush.msra.mxu0 0.0
  %774 = vmatpush.msra.mxu0 0.0
  %775 = vmatpush.msra.mxu0 0.0
  %776 = vmatpush.msra.mxu0 0.0
  %777 = vmatpush.msra.mxu0 0.0
  %778 = vmatpush.msra.mxu0 0.0
  %779 = vmatpush.msra.mxu0 0.0
  %780 = vmatpush.msra.mxu0 0.0
  %781 = vmatpush.msra.mxu0 0.0
  %782 = vmatpush.msra.mxu0 0.0
  %783 = vmatpush.msra.mxu0 %v744
  %784 = vmatpush.msra.mxu0 %v743
  %785 = vmatpush.msra.mxu0 %v742
  %786 = vmatpush.msra.mxu0 %v741
  %787 = vmatmul.f32.gmra.mxu0 %v718
  %v788 = vpop.f32.mrf.mxu0
  %v789 = vadd.f32 %v769, %v788
  %790 = vdwg.mxu0
  %v791 = vadd.f32 %v789, %v29
  %v792 = vmul.f32 %v791, %v25
  %v793 = vtanh.pop %v792
  %v794 = vmul.f32 %v793, %v25
  %v795 = vadd.f32 %v794, %v26
  %v796 = vmul.f32 %v795, %v675
  %798 = vrot.lane.b32.xlu0 %v795, 64
  %v799 = vpop.permute.xlu0 %798
  %v801 = vmul.f32 %v795, %v799
  %803 = vrot.lane.b32.xlu0 %v801, 32
  %v804 = vpop.permute.xlu0 %803
  %v806 = vadd.f32 %v796, %v804
  %v807 = vtanh.pop %v806
  %809 = vrot.lane.b32.xlu0 %v807, 64
  %v810 = vpop.permute.xlu0 %809
  %v812 = vmul.f32 %v795, %v810
  %814 = vrot.lane.b32.xlu0 %v812, 32
  %v815 = vpop.permute.xlu0 %814
  %s817 = scalar_lea.vmem %s5, 40
  %818 = vst.msk [vmem:[%s817] sm:$0xff] %vm62, %v815
  %v819 = vmul.f32 %v740, %v25
  %v820 = vtanh.pop %v819
  %v821 = vmul.f32 %v820, %v25
  %v822 = vadd.f32 %v821, %v26
  %v823 = vmul.f32 %v822, %v702
  %825 = vrot.lane.b32.xlu0 %v822, 64
  %v826 = vpop.permute.xlu0 %825
  %v828 = vmul.f32 %v822, %v826
  %830 = vrot.lane.b32.xlu0 %v828, 32
  %v831 = vpop.permute.xlu0 %830
  %v833 = vadd.f32 %v823, %v831
  %v834 = vtanh.pop %v833
  %836 = vrot.lane.b32.xlu0 %v834, 64
  %v837 = vpop.permute.xlu0 %836
  %v839 = vmul.f32 %v822, %v837
  %s840 = scalar_lea.vmem %s0, 56
  %v841 = vld [vmem:[%s840] sm:$0xff]
  %v842 = vld [vmem:[%s1] sm:$0xff]
  %v843 = vld [vmem:[%s1 + $0x8] sm:$0xff]
  %v844 = vld [vmem:[%s1 + $0x10] sm:$0xff]
  %v845 = vld [vmem:[%s1 + $0x18] sm:$0xff]
  %847 = vrot.lane.b32.xlu0 %v839, 32
  %v848 = vpop.permute.xlu0 %847
  %v849 = vsel %vm62, %v848, 0
  %851 = vmatpush.msra.mxu0 0.0
  %852 = vmatpush.msra.mxu0 0.0
  %853 = vmatpush.msra.mxu0 0.0
  %854 = vmatpush.msra.mxu0 0.0
  %855 = vmatpush.msra.mxu0 0.0
  %856 = vmatpush.msra.mxu0 0.0
  %857 = vmatpush.msra.mxu0 0.0
  %858 = vmatpush.msra.mxu0 0.0
  %859 = vmatpush.msra.mxu0 0.0
  %860 = vmatpush.msra.mxu0 0.0
  %861 = vmatpush.msra.mxu0 0.0
  %862 = vmatpush.msra.mxu0 0.0
  %863 = vmatpush.msra.mxu0 %v845
  %864 = vmatpush.msra.mxu0 %v844
  %865 = vmatpush.msra.mxu0 %v843
  %866 = vmatpush.msra.mxu0 %v842
  %867 = vmatmul.f32.gmra.mxu0 %v849
  %v868 = vpop.f32.mrf.mxu0
  %v869 = vadd.f32 0.0, %v868
  %870 = vdwg.mxu0
  %v871 = vadd.f32 %v841, %v869
  %v872 = vld [vmem:[%s2] sm:$0xff]
  %v873 = vld [vmem:[%s2 + $0x8] sm:$0xff]
  %v874 = vld [vmem:[%s2 + $0x10] sm:$0xff]
  %v875 = vld [vmem:[%s2 + $0x18] sm:$0xff]
  %v876 = vld [vmem:[%s3] sm:$0xff]
  %v877 = vld [vmem:[%s3 + $0x8] sm:$0xff]
  %v878 = vld [vmem:[%s3 + $0x10] sm:$0xff]
  %v879 = vld [vmem:[%s3 + $0x18] sm:$0xff]
  %v880 = vsel %vm62, %v815, 0
  %882 = vmatpush.msra.mxu0 0.0
  %883 = vmatpush.msra.mxu0 0.0
  %884 = vmatpush.msra.mxu0 0.0
  %885 = vmatpush.msra.mxu0 0.0
  %886 = vmatpush.msra.mxu0 0.0
  %887 = vmatpush.msra.mxu0 0.0
  %888 = vmatpush.msra.mxu0 0.0
  %889 = vmatpush.msra.mxu0 0.0
  %890 = vmatpush.msra.mxu0 0.0
  %891 = vmatpush.msra.mxu0 0.0
  %892 = vmatpush.msra.mxu0 0.0
  %893 = vmatpush.msra.mxu0 0.0
  %894 = vmatpush.msra.mxu0 %v879
  %895 = vmatpush.msra.mxu0 %v878
  %896 = vmatpush.msra.mxu0 %v877
  %897 = vmatpush.msra.mxu0 %v876
  %898 = vmatmul.f32.gmra.mxu0 %v880
  %v899 = vpop.f32.mrf.mxu0
  %v900 = vadd.f32 0.0, %v899
  %901 = vdwg.mxu0
  %902 = vmatpush.msra.mxu0 0.0
  %903 = vmatpush.msra.mxu0 0.0
  %904 = vmatpush.msra.mxu0 0.0
  %905 = vmatpush.msra.mxu0 0.0
  %906 = vmatpush.msra.mxu0 0.0
  %907 = vmatpush.msra.mxu0 0.0
  %908 = vmatpush.msra.mxu0 0.0
  %909 = vmatpush.msra.mxu0 0.0
  %910 = vmatpush.msra.mxu0 0.0
  %911 = vmatpush.msra.mxu0 0.0
  %912 = vmatpush.msra.mxu0 0.0
  %913 = vmatpush.msra.mxu0 0.0
  %914 = vmatpush.msra.mxu0 %v875
  %915 = vmatpush.msra.mxu0 %v874
  %916 = vmatpush.msra.mxu0 %v873
  %917 = vmatpush.msra.mxu0 %v872
  %918 = vmatmul.f32.gmra.mxu0 %v849
  %v919 = vpop.f32.mrf.mxu0
  %v920 = vadd.f32 %v900, %v919
  %921 = vdwg.mxu0
  %v922 = vadd.f32 %v920, %v29
  %v923 = vmul.f32 %v922, %v25
  %v924 = vtanh.pop %v923
  %v925 = vmul.f32 %v924, %v25
  %v926 = vadd.f32 %v925, %v26
  %v927 = vmul.f32 %v926, %v806
  %929 = vrot.lane.b32.xlu0 %v926, 64
  %v930 = vpop.permute.xlu0 %929
  %v932 = vmul.f32 %v926, %v930
  %934 = vrot.lane.b32.xlu0 %v932, 32
  %v935 = vpop.permute.xlu0 %934
  %v937 = vadd.f32 %v927, %v935
  %v938 = vtanh.pop %v937
  %940 = vrot.lane.b32.xlu0 %v938, 64
  %v941 = vpop.permute.xlu0 %940
  %v943 = vmul.f32 %v926, %v941
  %945 = vrot.lane.b32.xlu0 %v943, 32
  %v946 = vpop.permute.xlu0 %945
  %s948 = scalar_lea.vmem %s5, 48
  %949 = vst.msk [vmem:[%s948] sm:$0xff] %vm62, %v946
  %v950 = vmul.f32 %v871, %v25
  %v951 = vtanh.pop %v950
  %v952 = vmul.f32 %v951, %v25
  %v953 = vadd.f32 %v952, %v26
  %v954 = vmul.f32 %v953, %v833
  %956 = vrot.lane.b32.xlu0 %v953, 64
  %v957 = vpop.permute.xlu0 %956
  %v959 = vmul.f32 %v953, %v957
  %961 = vrot.lane.b32.xlu0 %v959, 32
  %v962 = vpop.permute.xlu0 %961
  %v964 = vadd.f32 %v954, %v962
  %v965 = vtanh.pop %v964
  %967 = vrot.lane.b32.xlu0 %v965, 64
  %v968 = vpop.permute.xlu0 %967
  %v970 = vmul.f32 %v953, %v968
  %v971 = vld [vmem:[%s2] sm:$0xff]
  %v972 = vld [vmem:[%s2 + $0x8] sm:$0xff]
  %v973 = vld [vmem:[%s2 + $0x10] sm:$0xff]
  %v974 = vld [vmem:[%s2 + $0x18] sm:$0xff]
  %v975 = vld [vmem:[%s3] sm:$0xff]
  %v976 = vld [vmem:[%s3 + $0x8] sm:$0xff]
  %v977 = vld [vmem:[%s3 + $0x10] sm:$0xff]
  %v978 = vld [vmem:[%s3 + $0x18] sm:$0xff]
  %v979 = vsel %vm62, %v946, 0
  %981 = vmatpush.msra.mxu0 0.0
  %982 = vmatpush.msra.mxu0 0.0
  %983 = vmatpush.msra.mxu0 0.0
  %984 = vmatpush.msra.mxu0 0.0
  %985 = vmatpush.msra.mxu0 0.0
  %986 = vmatpush.msra.mxu0 0.0
  %987 = vmatpush.msra.mxu0 0.0
  %988 = vmatpush.msra.mxu0 0.0
  %989 = vmatpush.msra.mxu0 0.0
  %990 = vmatpush.msra.mxu0 0.0
  %991 = vmatpush.msra.mxu0 0.0
  %992 = vmatpush.msra.mxu0 0.0
  %993 = vmatpush.msra.mxu0 %v978
  %994 = vmatpush.msra.mxu0 %v977
  %995 = vmatpush.msra.mxu0 %v976
  %996 = vmatpush.msra.mxu0 %v975
  %997 = vmatmul.f32.gmra.mxu0 %v979
  %v998 = vpop.f32.mrf.mxu0
  %v999 = vadd.f32 0.0, %v998
  %1000 = vdwg.mxu0
  %1002 = vrot.lane.b32.xlu0 %v970, 32
  %v1003 = vpop.permute.xlu0 %1002
  %v1004 = vsel %vm62, %v1003, 0
  %1006 = vmatpush.msra.mxu0 0.0
  %1007 = vmatpush.msra.mxu0 0.0
  %1008 = vmatpush.msra.mxu0 0.0
  %1009 = vmatpush.msra.mxu0 0.0
  %1010 = vmatpush.msra.mxu0 0.0
  %1011 = vmatpush.msra.mxu0 0.0
  %1012 = vmatpush.msra.mxu0 0.0
  %1013 = vmatpush.msra.mxu0 0.0
  %1014 = vmatpush.msra.mxu0 0.0
  %1015 = vmatpush.msra.mxu0 0.0
  %1016 = vmatpush.msra.mxu0 0.0
  %1017 = vmatpush.msra.mxu0 0.0
  %1018 = vmatpush.msra.mxu0 %v974
  %1019 = vmatpush.msra.mxu0 %v973
  %1020 = vmatpush.msra.mxu0 %v972
  %1021 = vmatpush.msra.mxu0 %v971
  %1022 = vmatmul.f32.gmra.mxu0 %v1004
  %v1023 = vpop.f32.mrf.mxu0
  %v1024 = vadd.f32 %v999, %v1023
  %1025 = vdwg.mxu0
  %v1026 = vadd.f32 %v1024, %v29
  %v1027 = vmul.f32 %v1026, %v25
  %v1028 = vtanh.pop %v1027
  %v1029 = vmul.f32 %v1028, %v25
  %v1030 = vadd.f32 %v1029, %v26
  %v1031 = vmul.f32 %v1030, %v937
  %1033 = vrot.lane.b32.xlu0 %v1030, 64
  %v1034 = vpop.permute.xlu0 %1033
  %v1036 = vmul.f32 %v1030, %v1034
  %1038 = vrot.lane.b32.xlu0 %v1036, 32
  %v1039 = vpop.permute.xlu0 %1038
  %v1041 = vadd.f32 %v1031, %v1039
  %v1042 = vtanh.pop %v1041
  %1044 = vrot.lane.b32.xlu0 %v1042, 64
  %v1045 = vpop.permute.xlu0 %1044
  %v1047 = vmul.f32 %v1030, %v1045
  %1049 = vrot.lane.b32.xlu0 %v1047, 32
  %v1050 = vpop.permute.xlu0 %1049
  %s1052 = scalar_lea.vmem %s5, 56
  %1053 = vst.msk [vmem:[%s1052] sm:$0xff] %vm62, %v1050
  // Predicated region
  $region22: #{lstm_reg_forward.1} parent=0 // pred_check
    _
  $region23: #{lstm_reg_forward.1} parent=0 // pred_check_branch
    %1055 = sbr.rel (0) target = $region25
  $region24: #{lstm_reg_forward.1} parent=0 // pred_region
    _
  $region25: #{lstm_reg_forward.1} parent=0 // pred_fallthru
    _
  // Predicated region
  $region26: #{lstm_reg_forward.1} parent=0 // pred_check
    _
  $region27: #{lstm_reg_forward.1} parent=0 // pred_check_branch
    %1057 = sbr.rel (0) target = $region29
  $region28: #{lstm_reg_forward.1} parent=0 // pred_region
    _
  $region29: #{lstm_reg_forward.1} parent=0 // pred_fallthru
    _

</llo_original>
